<compile_context>
chip_gen: v5e
topology: v5e:2x2
jax: 0.10.0
libtpu: 0.0.40
codegen_flags: <defaults>
</compile_context>

<pallas_src>
import functools

import jax
import jax.numpy as jnp
from jax.experimental import pallas as pl
from jax.experimental.pallas import tpu as pltpu


# ----------------------------------------------------------------------------
# Pallas kernel: both GRU directions over one time-block.
# ----------------------------------------------------------------------------
def _bigru_rec_kernel(gi_f_ref, gi_b_ref, whh_f_ref, whh_b_ref,
                      bnf_ref, bnb_ref, out_f_ref, out_b_ref,
                      hf_scr, hb_scr, *, tb, t_real, n_blocks, unroll):
    """gi_*:(Tb,B,3H)  whh_*:(H,3H)  bn*:(1,H)  out_*:(Tb,B,H)  h*_scr:(B,H).

    Forward reads block i in natural order; backward reads block
    (n_blocks-1-i) and walks it back-to-front, so both recurrences advance
    together on the same grid step with zero pre-reversed copies in HBM.
    """

    @pl.when(pl.program_id(0) == 0)
    def _init():
        hf_scr[...] = jnp.zeros_like(hf_scr)
        hb_scr[...] = jnp.zeros_like(hb_scr)

    B, H = hf_scr.shape
    whh_f = whh_f_ref[...]                      # resident recurrent weights
    whh_b = whh_b_ref[...]
    w_dt = whh_f.dtype
    # Hoisted (1,H)->(B,H) broadcasts (JAX does not CSE broadcast_in_dim).
    bnf = jnp.broadcast_to(bnf_ref[...], (B, H))
    bnb = jnp.broadcast_to(bnb_ref[...], (B, H))

    needs_guard = (n_blocks * tb != t_real)     # zero-pad tail present?
    blk = pl.program_id(0)

    def step(s, carry):
        h_f, h_b = carry
        gif = gi_f_ref[s]                       # (B,3H) hoisted x-projection
        gib = gi_b_ref[tb - 1 - s]              # reversed row of reversed block
        ghf = jnp.dot(h_f.astype(w_dt), whh_f,
                      preferred_element_type=jnp.float32)   # (B,3H) on MXU
        ghb = jnp.dot(h_b.astype(w_dt), whh_b,
                      preferred_element_type=jnp.float32)
        # Fused r|z sigmoid over one (B,2H) slab per direction.
        rz_f = jax.nn.sigmoid(gif[:, :2 * H] + ghf[:, :2 * H])
        rz_b = jax.nn.sigmoid(gib[:, :2 * H] + ghb[:, :2 * H])
        n_f = jnp.tanh(gif[:, 2 * H:] + rz_f[:, :H] * (ghf[:, 2 * H:] + bnf))
        n_b = jnp.tanh(gib[:, 2 * H:] + rz_b[:, :H] * (ghb[:, 2 * H:] + bnb))
        z_f = rz_f[:, H:]
        z_b = rz_b[:, H:]
        h_f_new = (1.0 - z_f) * n_f + z_f * h_f
        h_b_new = (1.0 - z_b) * n_b + z_b * h_b
        if needs_guard:
            # Backward sweep meets the zero pad FIRST; freeze h_b through it.
            t_back = (n_blocks - 1 - blk) * tb + (tb - 1 - s)
            h_b_new = jnp.where(t_back < t_real, h_b_new, h_b)
        out_f_ref[s] = h_f_new
        out_b_ref[tb - 1 - s] = h_b_new
        return h_f_new, h_b_new

    h_f, h_b = jax.lax.fori_loop(0, tb, step, (hf_scr[...], hb_scr[...]),
                                 unroll=unroll)
    hf_scr[...] = h_f                           # persist carry across blocks
    hb_scr[...] = h_b


# ----------------------------------------------------------------------------
# VMEM-budget-aware block planning.
# ----------------------------------------------------------------------------
def _plan_blocks(T, B, H, requested_tb, w_bytes, budget_bytes=48 << 20):
    # Resident: two (H,3H) weights (double-buffered), biases, h scratch.
    resident = 2 * 2 * H * 3 * H * w_bytes + 2 * 2 * H * 4 + 2 * B * H * 4
    # Streaming per timestep (f32): gi_f + gi_b in, out_f + out_b.
    per_t = (2 * B * 3 * H + 2 * B * H) * 4
    tb_fit = max(1, (budget_bytes - resident) // (2 * per_t))   # dbl-buffered
    tb = int(max(1, min(requested_tb, T, tb_fit)))
    n_blocks = pl.cdiv(T, tb)
    need = resident + 2 * per_t * tb
    vmem_limit = int(min(100 << 20, max(2 * need, 32 << 20)))
    return tb, n_blocks, vmem_limit


# ----------------------------------------------------------------------------
# Wrapper: projection hoist + time-blocked pallas_call.
# ----------------------------------------------------------------------------
def encoder_forward(src, params, *, time_block=64, matmul_dtype=jnp.bfloat16):
    """src: (T, B) int32 -> (T, B, 2H) f32.

    matmul_dtype controls only the recurrent-weight operand dtype (MXU side);
    the hidden carry and gate math stay float32.
    """
    emb = params["embedding"][src]                        # (T,B,E) gather (XLA)
    T, B, E = emb.shape
    H = params["whh_f"].shape[0]

    # Hoisted input projections; b_ih and the r/z part of b_hh are folded in,
    # only the n-gate b_hh stays inside the recurrence (multiplied by r).
    def proj(w_ih, b_ih, b_hh):
        bias = b_ih.at[:, :2 * H].add(b_hh[:, :2 * H])
        return jnp.einsum("tbe,eg->tbg", emb, w_ih,
                          preferred_element_type=jnp.float32) + bias

    gi_f = proj(params["wih_f"], params["bih_f"], params["bhh_f"])   # (T,B,3H)
    gi_b = proj(params["wih_b"], params["bih_b"], params["bhh_b"])   # (T,B,3H)

    whh_f = params["whh_f"].astype(matmul_dtype)          # (H,3H)
    whh_b = params["whh_b"].astype(matmul_dtype)
    bnf = params["bhh_f"][:, 2 * H:]                      # (1,H) n-gate bias
    bnb = params["bhh_b"][:, 2 * H:]

    w_bytes = jnp.dtype(matmul_dtype).itemsize
    tb, n_blocks, vmem_limit = _plan_blocks(T, B, H, time_block, w_bytes)
    unroll = max(1, min(8, tb))
    t_pad = n_blocks * tb
    if t_pad != T:
        pad = ((0, t_pad - T), (0, 0), (0, 0))
        gi_f = jnp.pad(gi_f, pad)
        gi_b = jnp.pad(gi_b, pad)

    kernel = functools.partial(_bigru_rec_kernel, tb=tb, t_real=T,
                               n_blocks=n_blocks, unroll=unroll)

    out_f, out_b = pl.pallas_call(
        kernel,
        out_shape=(jax.ShapeDtypeStruct((t_pad, B, H), jnp.float32),
                   jax.ShapeDtypeStruct((t_pad, B, H), jnp.float32)),
        grid_spec=pltpu.PrefetchScalarGridSpec(
            num_scalar_prefetch=0,
            grid=(n_blocks,),
            in_specs=[
                pl.BlockSpec((tb, B, 3 * H), lambda i: (i, 0, 0)),            # gi fwd
                pl.BlockSpec((tb, B, 3 * H), lambda i: (n_blocks - 1 - i, 0, 0)),  # gi bwd
                pl.BlockSpec((H, 3 * H), lambda i: (0, 0)),                   # W_hh fwd
                pl.BlockSpec((H, 3 * H), lambda i: (0, 0)),                   # W_hh bwd
                pl.BlockSpec((1, H), lambda i: (0, 0)),                       # b_hh_n fwd
                pl.BlockSpec((1, H), lambda i: (0, 0)),                       # b_hh_n bwd
            ],
            out_specs=[
                pl.BlockSpec((tb, B, H), lambda i: (i, 0, 0)),                # out fwd
                pl.BlockSpec((tb, B, H), lambda i: (n_blocks - 1 - i, 0, 0)),  # out bwd
            ],
            scratch_shapes=[pltpu.VMEM((B, H), jnp.float32),   # h_f carry
                            pltpu.VMEM((B, H), jnp.float32)],  # h_b carry
        ),
        compiler_params=pltpu.CompilerParams(
            dimension_semantics=("arbitrary",),     # sequential recurrence
            vmem_limit_bytes=vmem_limit,
        ),
    )(gi_f, gi_b, whh_f, whh_b, bnf, bnb)

    return jnp.concatenate([out_f[:T], out_b[:T]], axis=-1)


# ----------------------------------------------------------------------------
# Parameter init (weights pre-transposed to (in_dim, 3H) so kernels do x @ W).
# ----------------------------------------------------------------------------
def init_params(key, vocab, embed_dim, hidden):
    ks = jax.random.split(key, 9)
    bound = 1.0 / jnp.sqrt(hidden)
    u = lambda k, shape: jax.random.uniform(k, shape, jnp.float32, -bound, bound)
    return {
        "embedding": jax.random.normal(ks[0], (vocab, embed_dim), jnp.float32),
        "wih_f": u(ks[1], (embed_dim, 3 * hidden)),
        "whh_f": u(ks[2], (hidden, 3 * hidden)),
        "bih_f": u(ks[3], (1, 3 * hidden)),
        "bhh_f": u(ks[4], (1, 3 * hidden)),
        "wih_b": u(ks[5], (embed_dim, 3 * hidden)),
        "whh_b": u(ks[6], (hidden, 3 * hidden)),
        "bih_b": u(ks[7], (1, 3 * hidden)),
        "bhh_b": u(ks[8], (1, 3 * hidden)),
    }


# ----------------------------------------------------------------------------
# Pure-JAX reference (per-step PyTorch GRU math) for correctness.
# ----------------------------------------------------------------------------
def _gru_cell(x, h, w_ih, w_hh, b_ih, b_hh):
    hidden = h.shape[-1]
    gi = jnp.dot(x, w_ih, preferred_element_type=jnp.float32) + b_ih
    gh = jnp.dot(h, w_hh, preferred_element_type=jnp.float32) + b_hh
    r = jax.nn.sigmoid(gi[:, 0:hidden] + gh[:, 0:hidden])
    z = jax.nn.sigmoid(gi[:, hidden:2 * hidden] + gh[:, hidden:2 * hidden])
    n = jnp.tanh(gi[:, 2 * hidden:] + r * gh[:, 2 * hidden:])
    return (1.0 - z) * n + z * h


def reference_forward(src, params):
    emb = params["embedding"][src].astype(jnp.float32)     # (T,B,E)
    T, B, _ = emb.shape
    H = params["whh_f"].shape[0]

    def scan_dir(xs, wih, whh, bih, bhh):
        def step(h, x):
            h_new = _gru_cell(x, h, wih, whh, bih, bhh)
            return h_new, h_new
        h0 = jnp.zeros((B, H), jnp.float32)
        _, hs = jax.lax.scan(step, h0, xs)
        return hs

    out_f = scan_dir(emb, params["wih_f"], params["whh_f"],
                     params["bih_f"], params["bhh_f"])
    out_b = scan_dir(emb[::-1], params["wih_b"], params["whh_b"],
                     params["bih_b"], params["bhh_b"])[::-1]
    return jnp.concatenate([out_f, out_b], axis=-1)


if __name__ == "__main__":
    VOCAB, EMBED, HIDDEN = 50, 32, 32
    T, B = 8, 4

    key = jax.random.PRNGKey(0)
    k_param, k_src = jax.random.split(key)
    params = init_params(k_param, VOCAB, EMBED, HIDDEN)
    src = jax.random.randint(k_src, (T, B), 0, VOCAB, dtype=jnp.int32)

    ref = jax.block_until_ready(reference_forward(src, params))

    # f32 path with a small time_block -> exercises padding, the backward-pad
    # guard, multi-block grid and the reversed block index maps; tight check.
    f32_fn = jax.jit(functools.partial(encoder_forward, time_block=5,
                                       matmul_dtype=jnp.float32))
    out_f32 = jax.block_until_ready(f32_fn(src, params))
    assert out_f32.shape == (T, B, 2 * HIDDEN), out_f32.shape
    assert jnp.allclose(out_f32, ref, atol=2e-4, rtol=2e-4), \
        float(jnp.abs(out_f32 - ref).max())

    # Default (bf16 recurrent weights) path; looser tolerance is expected
    # precision loss from bf16 MXU operands, not a structural bug.
    bf16_fn = jax.jit(encoder_forward)
    out_bf16 = jax.block_until_ready(bf16_fn(src, params))
    assert out_bf16.shape == (T, B, 2 * HIDDEN), out_bf16.shape
    assert jnp.allclose(out_bf16, ref, atol=1e-1, rtol=1e-1), \
        float(jnp.abs(out_bf16 - ref).max())

    print("KERNEL_OK")
</pallas_src>

<mosaic_0001>
module attributes {stable_mosaic.version = 11 : i64} {
  func.func @_bigru_rec_kernel(%arg0: i32, %arg1: memref<5x4x96xf32, #tpu.memory_space<vmem>>, %arg2: memref<5x4x96xf32, #tpu.memory_space<vmem>>, %arg3: memref<32x96xf32, #tpu.memory_space<vmem>>, %arg4: memref<32x96xf32, #tpu.memory_space<vmem>>, %arg5: memref<1x32xf32, #tpu.memory_space<vmem>>, %arg6: memref<1x32xf32, #tpu.memory_space<vmem>>, %arg7: memref<5x4x32xf32, #tpu.memory_space<vmem>>, %arg8: memref<5x4x32xf32, #tpu.memory_space<vmem>>, %arg9: memref<4x32xf32, #tpu.memory_space<vmem>>, %arg10: memref<4x32xf32, #tpu.memory_space<vmem>>) attributes {dimension_semantics = [#tpu.dimension_semantics<arbitrary>], iteration_bounds = array<i64: 2>, scalar_prefetch = 0 : i64, scratch_operands = 2 : i64, tpu.core_type = #tpu.core_type<tc>, window_params = [{transform_indices = @transform_0, window_bounds = array<i64: 5, 4, 96>}, {transform_indices = @transform_1, window_bounds = array<i64: 5, 4, 96>}, {pipeline_mode = #tpu.pipeline_mode<synchronous>, transform_indices = @transform_2, window_bounds = array<i64: 32, 96>}, {pipeline_mode = #tpu.pipeline_mode<synchronous>, transform_indices = @transform_3, window_bounds = array<i64: 32, 96>}, {pipeline_mode = #tpu.pipeline_mode<synchronous>, transform_indices = @transform_4, window_bounds = array<i64: 1, 32>}, {pipeline_mode = #tpu.pipeline_mode<synchronous>, transform_indices = @transform_5, window_bounds = array<i64: 1, 32>}, {transform_indices = @transform_6, window_bounds = array<i64: 5, 4, 32>}, {transform_indices = @transform_7, window_bounds = array<i64: 5, 4, 32>}]} {
    %c0_i32 = arith.constant 0 : i32
    %0 = arith.cmpi eq, %arg0, %c0_i32 : i32
    %1 = arith.extui %0 : i1 to i32
    %c0_i32_0 = arith.constant 0 : i32
    %2 = arith.cmpi ne, %1, %c0_i32_0 : i32
    scf.if %2 {
      %cst_115 = arith.constant 0.000000e+00 : f32
      %345 = vector.broadcast %cst_115 : f32 to vector<4x32xf32>
      %c0_116 = arith.constant 0 : index
      %c0_117 = arith.constant 0 : index
      %346 = vector.load %arg9[%c0_116, %c0_117] : memref<4x32xf32, #tpu.memory_space<vmem>>, vector<4x32xf32>
      tpu.vector_store %arg9[%c0_116, %c0_117], %345 {strides = array<i32>} : memref<4x32xf32, #tpu.memory_space<vmem>>, vector<4x32xf32>,
      %cst_118 = arith.constant 0.000000e+00 : f32
      %347 = vector.broadcast %cst_118 : f32 to vector<4x32xf32>
      %c0_119 = arith.constant 0 : index
      %c0_120 = arith.constant 0 : index
      %348 = vector.load %arg10[%c0_119, %c0_120] : memref<4x32xf32, #tpu.memory_space<vmem>>, vector<4x32xf32>
      tpu.vector_store %arg10[%c0_119, %c0_120], %347 {strides = array<i32>} : memref<4x32xf32, #tpu.memory_space<vmem>>, vector<4x32xf32>,
    } else {
    }
    %c0 = arith.constant 0 : index
    %c0_1 = arith.constant 0 : index
    %3 = vector.load %arg3[%c0, %c0_1] : memref<32x96xf32, #tpu.memory_space<vmem>>, vector<32x96xf32>
    %c0_2 = arith.constant 0 : index
    %c0_3 = arith.constant 0 : index
    %4 = vector.load %arg4[%c0_2, %c0_3] : memref<32x96xf32, #tpu.memory_space<vmem>>, vector<32x96xf32>
    %c0_4 = arith.constant 0 : index
    %c0_5 = arith.constant 0 : index
    %5 = vector.load %arg5[%c0_4, %c0_5] : memref<1x32xf32, #tpu.memory_space<vmem>>, vector<1x32xf32>
    %6 = vector.shape_cast %5 : vector<1x32xf32> to vector<1x32xf32>
    %7 = vector.broadcast %6 : vector<1x32xf32> to vector<4x32xf32>
    %c0_6 = arith.constant 0 : index
    %c0_7 = arith.constant 0 : index
    %8 = vector.load %arg6[%c0_6, %c0_7] : memref<1x32xf32, #tpu.memory_space<vmem>>, vector<1x32xf32>
    %9 = vector.shape_cast %8 : vector<1x32xf32> to vector<1x32xf32>
    %10 = vector.broadcast %9 : vector<1x32xf32> to vector<4x32xf32>
    %c0_8 = arith.constant 0 : index
    %c0_9 = arith.constant 0 : index
    %11 = vector.load %arg9[%c0_8, %c0_9] : memref<4x32xf32, #tpu.memory_space<vmem>>, vector<4x32xf32>
    %c0_10 = arith.constant 0 : index
    %c0_11 = arith.constant 0 : index
    %12 = vector.load %arg10[%c0_10, %c0_11] : memref<4x32xf32, #tpu.memory_space<vmem>>, vector<4x32xf32>
    %c0_i32_12 = arith.constant 0 : i32
    %13 = arith.index_cast %c0_i32_12 : i32 to index
    %c0_13 = arith.constant 0 : index
    %c0_14 = arith.constant 0 : index
    %14 = vector.load %arg1[%13, %c0_13, %c0_14] : memref<5x4x96xf32, #tpu.memory_space<vmem>>, vector<1x4x96xf32>
    %15 = vector.shape_cast %14 : vector<1x4x96xf32> to vector<4x96xf32>
    %c4_i32 = arith.constant 4 : i32
    %16 = arith.subi %c4_i32, %c0_i32_12 : i32
    %17 = arith.index_cast %16 : i32 to index
    %c0_15 = arith.constant 0 : index
    %c0_16 = arith.constant 0 : index
    %18 = vector.load %arg2[%17, %c0_15, %c0_16] : memref<5x4x96xf32, #tpu.memory_space<vmem>>, vector<1x4x96xf32>
    %19 = vector.shape_cast %18 : vector<1x4x96xf32> to vector<4x96xf32>
    %cst = arith.constant dense<0.000000e+00> : vector<4x96xf32>
    %20 = tpu.matmul %11, %3, %cst {dimension_numbers = #tpu.dot_dimension_numbers<[1], [0], [0], [1], [0, 0, 1, 1], [], []>} : vector<4x32xf32>, vector<32x96xf32>, vector<4x96xf32> -> vector<4x96xf32>
    %cst_17 = arith.constant dense<0.000000e+00> : vector<4x96xf32>
    %21 = tpu.matmul %12, %4, %cst_17 {dimension_numbers = #tpu.dot_dimension_numbers<[1], [0], [0], [1], [0, 0, 1, 1], [], []>} : vector<4x32xf32>, vector<32x96xf32>, vector<4x96xf32> -> vector<4x96xf32>
    %22 = vector.extract_strided_slice %15 {offsets = [0, 0], sizes = [4, 64], strides = [1, 1]} : vector<4x96xf32> to vector<4x64xf32>
    %23 = vector.extract_strided_slice %20 {offsets = [0, 0], sizes = [4, 64], strides = [1, 1]} : vector<4x96xf32> to vector<4x64xf32>
    %24 = arith.addf %22, %23 : vector<4x64xf32>
    %25 = arith.negf %24 : vector<4x64xf32>
    %26 = math.exp %25 : vector<4x64xf32>
    %cst_18 = arith.constant 1.000000e+00 : f32
    %27 = vector.broadcast %cst_18 : f32 to vector<4x64xf32>
    %28 = arith.addf %27, %26 : vector<4x64xf32>
    %29 = arith.divf %27, %28 : vector<4x64xf32>
    %30 = vector.extract_strided_slice %19 {offsets = [0, 0], sizes = [4, 64], strides = [1, 1]} : vector<4x96xf32> to vector<4x64xf32>
    %31 = vector.extract_strided_slice %21 {offsets = [0, 0], sizes = [4, 64], strides = [1, 1]} : vector<4x96xf32> to vector<4x64xf32>
    %32 = arith.addf %30, %31 : vector<4x64xf32>
    %33 = arith.negf %32 : vector<4x64xf32>
    %34 = math.exp %33 : vector<4x64xf32>
    %cst_19 = arith.constant 1.000000e+00 : f32
    %35 = vector.broadcast %cst_19 : f32 to vector<4x64xf32>
    %36 = arith.addf %35, %34 : vector<4x64xf32>
    %37 = arith.divf %35, %36 : vector<4x64xf32>
    %38 = vector.extract_strided_slice %15 {offsets = [0, 64], sizes = [4, 32], strides = [1, 1]} : vector<4x96xf32> to vector<4x32xf32>
    %39 = vector.extract_strided_slice %29 {offsets = [0, 0], sizes = [4, 32], strides = [1, 1]} : vector<4x64xf32> to vector<4x32xf32>
    %40 = vector.extract_strided_slice %20 {offsets = [0, 64], sizes = [4, 32], strides = [1, 1]} : vector<4x96xf32> to vector<4x32xf32>
    %41 = arith.addf %40, %7 : vector<4x32xf32>
    %42 = arith.mulf %39, %41 : vector<4x32xf32>
    %43 = arith.addf %38, %42 : vector<4x32xf32>
    %44 = math.tanh %43 : vector<4x32xf32>
    %45 = vector.extract_strided_slice %19 {offsets = [0, 64], sizes = [4, 32], strides = [1, 1]} : vector<4x96xf32> to vector<4x32xf32>
    %46 = vector.extract_strided_slice %37 {offsets = [0, 0], sizes = [4, 32], strides = [1, 1]} : vector<4x64xf32> to vector<4x32xf32>
    %47 = vector.extract_strided_slice %21 {offsets = [0, 64], sizes = [4, 32], strides = [1, 1]} : vector<4x96xf32> to vector<4x32xf32>
    %48 = arith.addf %47, %10 : vector<4x32xf32>
    %49 = arith.mulf %46, %48 : vector<4x32xf32>
    %50 = arith.addf %45, %49 : vector<4x32xf32>
    %51 = math.tanh %50 : vector<4x32xf32>
    %52 = vector.extract_strided_slice %29 {offsets = [0, 32], sizes = [4, 32], strides = [1, 1]} : vector<4x64xf32> to vector<4x32xf32>
    %53 = vector.extract_strided_slice %37 {offsets = [0, 32], sizes = [4, 32], strides = [1, 1]} : vector<4x64xf32> to vector<4x32xf32>
    %cst_20 = arith.constant 1.000000e+00 : f32
    %54 = vector.broadcast %cst_20 : f32 to vector<4x32xf32>
    %55 = arith.subf %54, %52 : vector<4x32xf32>
    %56 = arith.mulf %55, %44 : vector<4x32xf32>
    %57 = arith.mulf %52, %11 : vector<4x32xf32>
    %58 = arith.addf %56, %57 : vector<4x32xf32>
    %cst_21 = arith.constant 1.000000e+00 : f32
    %59 = vector.broadcast %cst_21 : f32 to vector<4x32xf32>
    %60 = arith.subf %59, %53 : vector<4x32xf32>
    %61 = arith.mulf %60, %51 : vector<4x32xf32>
    %62 = arith.mulf %53, %12 : vector<4x32xf32>
    %63 = arith.addf %61, %62 : vector<4x32xf32>
    %c1_i32 = arith.constant 1 : i32
    %64 = arith.subi %c1_i32, %arg0 : i32
    %c5_i32 = arith.constant 5 : i32
    %65 = arith.muli %64, %c5_i32 : i32
    %c4_i32_22 = arith.constant 4 : i32
    %66 = arith.subi %c4_i32_22, %c0_i32_12 : i32
    %67 = arith.addi %65, %66 : i32
    %c8_i32 = arith.constant 8 : i32
    %68 = arith.cmpi slt, %67, %c8_i32 : i32
    %69 = arith.select %68, %63, %12 : vector<4x32xf32>
    %70 = arith.index_cast %c0_i32_12 : i32 to index
    %c0_23 = arith.constant 0 : index
    %c0_24 = arith.constant 0 : index
    %71 = vector.load %arg7[%70, %c0_23, %c0_24] : memref<5x4x32xf32, #tpu.memory_space<vmem>>, vector<1x4x32xf32>
    %72 = vector.shape_cast %71 : vector<1x4x32xf32> to vector<4x32xf32>
    %73 = vector.shape_cast %58 : vector<4x32xf32> to vector<1x4x32xf32>
    tpu.vector_store %arg7[%70, %c0_23, %c0_24], %73 {strides = array<i32>} : memref<5x4x32xf32, #tpu.memory_space<vmem>>, vector<1x4x32xf32>,
    %c4_i32_25 = arith.constant 4 : i32
    %74 = arith.subi %c4_i32_25, %c0_i32_12 : i32
    %75 = arith.index_cast %74 : i32 to index
    %c0_26 = arith.constant 0 : index
    %c0_27 = arith.constant 0 : index
    %76 = vector.load %arg8[%75, %c0_26, %c0_27] : memref<5x4x32xf32, #tpu.memory_space<vmem>>, vector<1x4x32xf32>
    %77 = vector.shape_cast %76 : vector<1x4x32xf32> to vector<4x32xf32>
    %78 = vector.shape_cast %69 : vector<4x32xf32> to vector<1x4x32xf32>
    tpu.vector_store %arg8[%75, %c0_26, %c0_27], %78 {strides = array<i32>} : memref<5x4x32xf32, #tpu.memory_space<vmem>>, vector<1x4x32xf32>,
    %c1_i32_28 = arith.constant 1 : i32
    %79 = arith.index_cast %c1_i32_28 : i32 to index
    %c0_29 = arith.constant 0 : index
    %c0_30 = arith.constant 0 : index
    %80 = vector.load %arg1[%79, %c0_29, %c0_30] : memref<5x4x96xf32, #tpu.memory_space<vmem>>, vector<1x4x96xf32>
    %81 = vector.shape_cast %80 : vector<1x4x96xf32> to vector<4x96xf32>
    %c4_i32_31 = arith.constant 4 : i32
    %82 = arith.subi %c4_i32_31, %c1_i32_28 : i32
    %83 = arith.index_cast %82 : i32 to index
    %c0_32 = arith.constant 0 : index
    %c0_33 = arith.constant 0 : index
    %84 = vector.load %arg2[%83, %c0_32, %c0_33] : memref<5x4x96xf32, #tpu.memory_space<vmem>>, vector<1x4x96xf32>
    %85 = vector.shape_cast %84 : vector<1x4x96xf32> to vector<4x96xf32>
    %cst_34 = arith.constant dense<0.000000e+00> : vector<4x96xf32>
    %86 = tpu.matmul %58, %3, %cst_34 {dimension_numbers = #tpu.dot_dimension_numbers<[1], [0], [0], [1], [0, 0, 1, 1], [], []>} : vector<4x32xf32>, vector<32x96xf32>, vector<4x96xf32> -> vector<4x96xf32>
    %cst_35 = arith.constant dense<0.000000e+00> : vector<4x96xf32>
    %87 = tpu.matmul %69, %4, %cst_35 {dimension_numbers = #tpu.dot_dimension_numbers<[1], [0], [0], [1], [0, 0, 1, 1], [], []>} : vector<4x32xf32>, vector<32x96xf32>, vector<4x96xf32> -> vector<4x96xf32>
    %88 = vector.extract_strided_slice %81 {offsets = [0, 0], sizes = [4, 64], strides = [1, 1]} : vector<4x96xf32> to vector<4x64xf32>
    %89 = vector.extract_strided_slice %86 {offsets = [0, 0], sizes = [4, 64], strides = [1, 1]} : vector<4x96xf32> to vector<4x64xf32>
    %90 = arith.addf %88, %89 : vector<4x64xf32>
    %91 = arith.negf %90 : vector<4x64xf32>
    %92 = math.exp %91 : vector<4x64xf32>
    %cst_36 = arith.constant 1.000000e+00 : f32
    %93 = vector.broadcast %cst_36 : f32 to vector<4x64xf32>
    %94 = arith.addf %93, %92 : vector<4x64xf32>
    %95 = arith.divf %93, %94 : vector<4x64xf32>
    %96 = vector.extract_strided_slice %85 {offsets = [0, 0], sizes = [4, 64], strides = [1, 1]} : vector<4x96xf32> to vector<4x64xf32>
    %97 = vector.extract_strided_slice %87 {offsets = [0, 0], sizes = [4, 64], strides = [1, 1]} : vector<4x96xf32> to vector<4x64xf32>
    %98 = arith.addf %96, %97 : vector<4x64xf32>
    %99 = arith.negf %98 : vector<4x64xf32>
    %100 = math.exp %99 : vector<4x64xf32>
    %cst_37 = arith.constant 1.000000e+00 : f32
    %101 = vector.broadcast %cst_37 : f32 to vector<4x64xf32>
    %102 = arith.addf %101, %100 : vector<4x64xf32>
    %103 = arith.divf %101, %102 : vector<4x64xf32>
    %104 = vector.extract_strided_slice %81 {offsets = [0, 64], sizes = [4, 32], strides = [1, 1]} : vector<4x96xf32> to vector<4x32xf32>
    %105 = vector.extract_strided_slice %95 {offsets = [0, 0], sizes = [4, 32], strides = [1, 1]} : vector<4x64xf32> to vector<4x32xf32>
    %106 = vector.extract_strided_slice %86 {offsets = [0, 64], sizes = [4, 32], strides = [1, 1]} : vector<4x96xf32> to vector<4x32xf32>
    %107 = arith.addf %106, %7 : vector<4x32xf32>
    %108 = arith.mulf %105, %107 : vector<4x32xf32>
    %109 = arith.addf %104, %108 : vector<4x32xf32>
    %110 = math.tanh %109 : vector<4x32xf32>
    %111 = vector.extract_strided_slice %85 {offsets = [0, 64], sizes = [4, 32], strides = [1, 1]} : vector<4x96xf32> to vector<4x32xf32>
    %112 = vector.extract_strided_slice %103 {offsets = [0, 0], sizes = [4, 32], strides = [1, 1]} : vector<4x64xf32> to vector<4x32xf32>
    %113 = vector.extract_strided_slice %87 {offsets = [0, 64], sizes = [4, 32], strides = [1, 1]} : vector<4x96xf32> to vector<4x32xf32>
    %114 = arith.addf %113, %10 : vector<4x32xf32>
    %115 = arith.mulf %112, %114 : vector<4x32xf32>
    %116 = arith.addf %111, %115 : vector<4x32xf32>
    %117 = math.tanh %116 : vector<4x32xf32>
    %118 = vector.extract_strided_slice %95 {offsets = [0, 32], sizes = [4, 32], strides = [1, 1]} : vector<4x64xf32> to vector<4x32xf32>
    %119 = vector.extract_strided_slice %103 {offsets = [0, 32], sizes = [4, 32], strides = [1, 1]} : vector<4x64xf32> to vector<4x32xf32>
    %cst_38 = arith.constant 1.000000e+00 : f32
    %120 = vector.broadcast %cst_38 : f32 to vector<4x32xf32>
    %121 = arith.subf %120, %118 : vector<4x32xf32>
    %122 = arith.mulf %121, %110 : vector<4x32xf32>
    %123 = arith.mulf %118, %58 : vector<4x32xf32>
    %124 = arith.addf %122, %123 : vector<4x32xf32>
    %cst_39 = arith.constant 1.000000e+00 : f32
    %125 = vector.broadcast %cst_39 : f32 to vector<4x32xf32>
    %126 = arith.subf %125, %119 : vector<4x32xf32>
    %127 = arith.mulf %126, %117 : vector<4x32xf32>
    %128 = arith.mulf %119, %69 : vector<4x32xf32>
    %129 = arith.addf %127, %128 : vector<4x32xf32>
    %c1_i32_40 = arith.constant 1 : i32
    %130 = arith.subi %c1_i32_40, %arg0 : i32
    %c5_i32_41 = arith.constant 5 : i32
    %131 = arith.muli %130, %c5_i32_41 : i32
    %c4_i32_42 = arith.constant 4 : i32
    %132 = arith.subi %c4_i32_42, %c1_i32_28 : i32
    %133 = arith.addi %131, %132 : i32
    %c8_i32_43 = arith.constant 8 : i32
    %134 = arith.cmpi slt, %133, %c8_i32_43 : i32
    %135 = arith.select %134, %129, %69 : vector<4x32xf32>
    %136 = arith.index_cast %c1_i32_28 : i32 to index
    %c0_44 = arith.constant 0 : index
    %c0_45 = arith.constant 0 : index
    %137 = vector.load %arg7[%136, %c0_44, %c0_45] : memref<5x4x32xf32, #tpu.memory_space<vmem>>, vector<1x4x32xf32>
    %138 = vector.shape_cast %137 : vector<1x4x32xf32> to vector<4x32xf32>
    %139 = vector.shape_cast %124 : vector<4x32xf32> to vector<1x4x32xf32>
    tpu.vector_store %arg7[%136, %c0_44, %c0_45], %139 {strides = array<i32>} : memref<5x4x32xf32, #tpu.memory_space<vmem>>, vector<1x4x32xf32>,
    %c4_i32_46 = arith.constant 4 : i32
    %140 = arith.subi %c4_i32_46, %c1_i32_28 : i32
    %141 = arith.index_cast %140 : i32 to index
    %c0_47 = arith.constant 0 : index
    %c0_48 = arith.constant 0 : index
    %142 = vector.load %arg8[%141, %c0_47, %c0_48] : memref<5x4x32xf32, #tpu.memory_space<vmem>>, vector<1x4x32xf32>
    %143 = vector.shape_cast %142 : vector<1x4x32xf32> to vector<4x32xf32>
    %144 = vector.shape_cast %135 : vector<4x32xf32> to vector<1x4x32xf32>
    tpu.vector_store %arg8[%141, %c0_47, %c0_48], %144 {strides = array<i32>} : memref<5x4x32xf32, #tpu.memory_space<vmem>>, vector<1x4x32xf32>,
    %c2_i32 = arith.constant 2 : i32
    %145 = arith.index_cast %c2_i32 : i32 to index
    %c0_49 = arith.constant 0 : index
    %c0_50 = arith.constant 0 : index
    %146 = vector.load %arg1[%145, %c0_49, %c0_50] : memref<5x4x96xf32, #tpu.memory_space<vmem>>, vector<1x4x96xf32>
    %147 = vector.shape_cast %146 : vector<1x4x96xf32> to vector<4x96xf32>
    %c4_i32_51 = arith.constant 4 : i32
    %148 = arith.subi %c4_i32_51, %c2_i32 : i32
    %149 = arith.index_cast %148 : i32 to index
    %c0_52 = arith.constant 0 : index
    %c0_53 = arith.constant 0 : index
    %150 = vector.load %arg2[%149, %c0_52, %c0_53] : memref<5x4x96xf32, #tpu.memory_space<vmem>>, vector<1x4x96xf32>
    %151 = vector.shape_cast %150 : vector<1x4x96xf32> to vector<4x96xf32>
    %cst_54 = arith.constant dense<0.000000e+00> : vector<4x96xf32>
    %152 = tpu.matmul %124, %3, %cst_54 {dimension_numbers = #tpu.dot_dimension_numbers<[1], [0], [0], [1], [0, 0, 1, 1], [], []>} : vector<4x32xf32>, vector<32x96xf32>, vector<4x96xf32> -> vector<4x96xf32>
    %cst_55 = arith.constant dense<0.000000e+00> : vector<4x96xf32>
    %153 = tpu.matmul %135, %4, %cst_55 {dimension_numbers = #tpu.dot_dimension_numbers<[1], [0], [0], [1], [0, 0, 1, 1], [], []>} : vector<4x32xf32>, vector<32x96xf32>, vector<4x96xf32> -> vector<4x96xf32>
    %154 = vector.extract_strided_slice %147 {offsets = [0, 0], sizes = [4, 64], strides = [1, 1]} : vector<4x96xf32> to vector<4x64xf32>
    %155 = vector.extract_strided_slice %152 {offsets = [0, 0], sizes = [4, 64], strides = [1, 1]} : vector<4x96xf32> to vector<4x64xf32>
    %156 = arith.addf %154, %155 : vector<4x64xf32>
    %157 = arith.negf %156 : vector<4x64xf32>
    %158 = math.exp %157 : vector<4x64xf32>
    %cst_56 = arith.constant 1.000000e+00 : f32
    %159 = vector.broadcast %cst_56 : f32 to vector<4x64xf32>
    %160 = arith.addf %159, %158 : vector<4x64xf32>
    %161 = arith.divf %159, %160 : vector<4x64xf32>
    %162 = vector.extract_strided_slice %151 {offsets = [0, 0], sizes = [4, 64], strides = [1, 1]} : vector<4x96xf32> to vector<4x64xf32>
    %163 = vector.extract_strided_slice %153 {offsets = [0, 0], sizes = [4, 64], strides = [1, 1]} : vector<4x96xf32> to vector<4x64xf32>
    %164 = arith.addf %162, %163 : vector<4x64xf32>
    %165 = arith.negf %164 : vector<4x64xf32>
    %166 = math.exp %165 : vector<4x64xf32>
    %cst_57 = arith.constant 1.000000e+00 : f32
    %167 = vector.broadcast %cst_57 : f32 to vector<4x64xf32>
    %168 = arith.addf %167, %166 : vector<4x64xf32>
    %169 = arith.divf %167, %168 : vector<4x64xf32>
    %170 = vector.extract_strided_slice %147 {offsets = [0, 64], sizes = [4, 32], strides = [1, 1]} : vector<4x96xf32> to vector<4x32xf32>
    %171 = vector.extract_strided_slice %161 {offsets = [0, 0], sizes = [4, 32], strides = [1, 1]} : vector<4x64xf32> to vector<4x32xf32>
    %172 = vector.extract_strided_slice %152 {offsets = [0, 64], sizes = [4, 32], strides = [1, 1]} : vector<4x96xf32> to vector<4x32xf32>
    %173 = arith.addf %172, %7 : vector<4x32xf32>
    %174 = arith.mulf %171, %173 : vector<4x32xf32>
    %175 = arith.addf %170, %174 : vector<4x32xf32>
    %176 = math.tanh %175 : vector<4x32xf32>
    %177 = vector.extract_strided_slice %151 {offsets = [0, 64], sizes = [4, 32], strides = [1, 1]} : vector<4x96xf32> to vector<4x32xf32>
    %178 = vector.extract_strided_slice %169 {offsets = [0, 0], sizes = [4, 32], strides = [1, 1]} : vector<4x64xf32> to vector<4x32xf32>
    %179 = vector.extract_strided_slice %153 {offsets = [0, 64], sizes = [4, 32], strides = [1, 1]} : vector<4x96xf32> to vector<4x32xf32>
    %180 = arith.addf %179, %10 : vector<4x32xf32>
    %181 = arith.mulf %178, %180 : vector<4x32xf32>
    %182 = arith.addf %177, %181 : vector<4x32xf32>
    %183 = math.tanh %182 : vector<4x32xf32>
    %184 = vector.extract_strided_slice %161 {offsets = [0, 32], sizes = [4, 32], strides = [1, 1]} : vector<4x64xf32> to vector<4x32xf32>
    %185 = vector.extract_strided_slice %169 {offsets = [0, 32], sizes = [4, 32], strides = [1, 1]} : vector<4x64xf32> to vector<4x32xf32>
    %cst_58 = arith.constant 1.000000e+00 : f32
    %186 = vector.broadcast %cst_58 : f32 to vector<4x32xf32>
    %187 = arith.subf %186, %184 : vector<4x32xf32>
    %188 = arith.mulf %187, %176 : vector<4x32xf32>
    %189 = arith.mulf %184, %124 : vector<4x32xf32>
    %190 = arith.addf %188, %189 : vector<4x32xf32>
    %cst_59 = arith.constant 1.000000e+00 : f32
    %191 = vector.broadcast %cst_59 : f32 to vector<4x32xf32>
    %192 = arith.subf %191, %185 : vector<4x32xf32>
    %193 = arith.mulf %192, %183 : vector<4x32xf32>
    %194 = arith.mulf %185, %135 : vector<4x32xf32>
    %195 = arith.addf %193, %194 : vector<4x32xf32>
    %c1_i32_60 = arith.constant 1 : i32
    %196 = arith.subi %c1_i32_60, %arg0 : i32
    %c5_i32_61 = arith.constant 5 : i32
    %197 = arith.muli %196, %c5_i32_61 : i32
    %c4_i32_62 = arith.constant 4 : i32
    %198 = arith.subi %c4_i32_62, %c2_i32 : i32
    %199 = arith.addi %197, %198 : i32
    %c8_i32_63 = arith.constant 8 : i32
    %200 = arith.cmpi slt, %199, %c8_i32_63 : i32
    %201 = arith.select %200, %195, %135 : vector<4x32xf32>
    %202 = arith.index_cast %c2_i32 : i32 to index
    %c0_64 = arith.constant 0 : index
    %c0_65 = arith.constant 0 : index
    %203 = vector.load %arg7[%202, %c0_64, %c0_65] : memref<5x4x32xf32, #tpu.memory_space<vmem>>, vector<1x4x32xf32>
    %204 = vector.shape_cast %203 : vector<1x4x32xf32> to vector<4x32xf32>
    %205 = vector.shape_cast %190 : vector<4x32xf32> to vector<1x4x32xf32>
    tpu.vector_store %arg7[%202, %c0_64, %c0_65], %205 {strides = array<i32>} : memref<5x4x32xf32, #tpu.memory_space<vmem>>, vector<1x4x32xf32>,
    %c4_i32_66 = arith.constant 4 : i32
    %206 = arith.subi %c4_i32_66, %c2_i32 : i32
    %207 = arith.index_cast %206 : i32 to index
    %c0_67 = arith.constant 0 : index
    %c0_68 = arith.constant 0 : index
    %208 = vector.load %arg8[%207, %c0_67, %c0_68] : memref<5x4x32xf32, #tpu.memory_space<vmem>>, vector<1x4x32xf32>
    %209 = vector.shape_cast %208 : vector<1x4x32xf32> to vector<4x32xf32>
    %210 = vector.shape_cast %201 : vector<4x32xf32> to vector<1x4x32xf32>
    tpu.vector_store %arg8[%207, %c0_67, %c0_68], %210 {strides = array<i32>} : memref<5x4x32xf32, #tpu.memory_space<vmem>>, vector<1x4x32xf32>,
    %c3_i32 = arith.constant 3 : i32
    %211 = arith.index_cast %c3_i32 : i32 to index
    %c0_69 = arith.constant 0 : index
    %c0_70 = arith.constant 0 : index
    %212 = vector.load %arg1[%211, %c0_69, %c0_70] : memref<5x4x96xf32, #tpu.memory_space<vmem>>, vector<1x4x96xf32>
    %213 = vector.shape_cast %212 : vector<1x4x96xf32> to vector<4x96xf32>
    %c4_i32_71 = arith.constant 4 : i32
    %214 = arith.subi %c4_i32_71, %c3_i32 : i32
    %215 = arith.index_cast %214 : i32 to index
    %c0_72 = arith.constant 0 : index
    %c0_73 = arith.constant 0 : index
    %216 = vector.load %arg2[%215, %c0_72, %c0_73] : memref<5x4x96xf32, #tpu.memory_space<vmem>>, vector<1x4x96xf32>
    %217 = vector.shape_cast %216 : vector<1x4x96xf32> to vector<4x96xf32>
    %cst_74 = arith.constant dense<0.000000e+00> : vector<4x96xf32>
    %218 = tpu.matmul %190, %3, %cst_74 {dimension_numbers = #tpu.dot_dimension_numbers<[1], [0], [0], [1], [0, 0, 1, 1], [], []>} : vector<4x32xf32>, vector<32x96xf32>, vector<4x96xf32> -> vector<4x96xf32>
    %cst_75 = arith.constant dense<0.000000e+00> : vector<4x96xf32>
    %219 = tpu.matmul %201, %4, %cst_75 {dimension_numbers = #tpu.dot_dimension_numbers<[1], [0], [0], [1], [0, 0, 1, 1], [], []>} : vector<4x32xf32>, vector<32x96xf32>, vector<4x96xf32> -> vector<4x96xf32>
    %220 = vector.extract_strided_slice %213 {offsets = [0, 0], sizes = [4, 64], strides = [1, 1]} : vector<4x96xf32> to vector<4x64xf32>
    %221 = vector.extract_strided_slice %218 {offsets = [0, 0], sizes = [4, 64], strides = [1, 1]} : vector<4x96xf32> to vector<4x64xf32>
    %222 = arith.addf %220, %221 : vector<4x64xf32>
    %223 = arith.negf %222 : vector<4x64xf32>
    %224 = math.exp %223 : vector<4x64xf32>
    %cst_76 = arith.constant 1.000000e+00 : f32
    %225 = vector.broadcast %cst_76 : f32 to vector<4x64xf32>
    %226 = arith.addf %225, %224 : vector<4x64xf32>
    %227 = arith.divf %225, %226 : vector<4x64xf32>
    %228 = vector.extract_strided_slice %217 {offsets = [0, 0], sizes = [4, 64], strides = [1, 1]} : vector<4x96xf32> to vector<4x64xf32>
    %229 = vector.extract_strided_slice %219 {offsets = [0, 0], sizes = [4, 64], strides = [1, 1]} : vector<4x96xf32> to vector<4x64xf32>
    %230 = arith.addf %228, %229 : vector<4x64xf32>
    %231 = arith.negf %230 : vector<4x64xf32>
    %232 = math.exp %231 : vector<4x64xf32>
    %cst_77 = arith.constant 1.000000e+00 : f32
    %233 = vector.broadcast %cst_77 : f32 to vector<4x64xf32>
    %234 = arith.addf %233, %232 : vector<4x64xf32>
    %235 = arith.divf %233, %234 : vector<4x64xf32>
    %236 = vector.extract_strided_slice %213 {offsets = [0, 64], sizes = [4, 32], strides = [1, 1]} : vector<4x96xf32> to vector<4x32xf32>
    %237 = vector.extract_strided_slice %227 {offsets = [0, 0], sizes = [4, 32], strides = [1, 1]} : vector<4x64xf32> to vector<4x32xf32>
    %238 = vector.extract_strided_slice %218 {offsets = [0, 64], sizes = [4, 32], strides = [1, 1]} : vector<4x96xf32> to vector<4x32xf32>
    %239 = arith.addf %238, %7 : vector<4x32xf32>
    %240 = arith.mulf %237, %239 : vector<4x32xf32>
    %241 = arith.addf %236, %240 : vector<4x32xf32>
    %242 = math.tanh %241 : vector<4x32xf32>
    %243 = vector.extract_strided_slice %217 {offsets = [0, 64], sizes = [4, 32], strides = [1, 1]} : vector<4x96xf32> to vector<4x32xf32>
    %244 = vector.extract_strided_slice %235 {offsets = [0, 0], sizes = [4, 32], strides = [1, 1]} : vector<4x64xf32> to vector<4x32xf32>
    %245 = vector.extract_strided_slice %219 {offsets = [0, 64], sizes = [4, 32], strides = [1, 1]} : vector<4x96xf32> to vector<4x32xf32>
    %246 = arith.addf %245, %10 : vector<4x32xf32>
    %247 = arith.mulf %244, %246 : vector<4x32xf32>
    %248 = arith.addf %243, %247 : vector<4x32xf32>
    %249 = math.tanh %248 : vector<4x32xf32>
    %250 = vector.extract_strided_slice %227 {offsets = [0, 32], sizes = [4, 32], strides = [1, 1]} : vector<4x64xf32> to vector<4x32xf32>
    %251 = vector.extract_strided_slice %235 {offsets = [0, 32], sizes = [4, 32], strides = [1, 1]} : vector<4x64xf32> to vector<4x32xf32>
    %cst_78 = arith.constant 1.000000e+00 : f32
    %252 = vector.broadcast %cst_78 : f32 to vector<4x32xf32>
    %253 = arith.subf %252, %250 : vector<4x32xf32>
    %254 = arith.mulf %253, %242 : vector<4x32xf32>
    %255 = arith.mulf %250, %190 : vector<4x32xf32>
    %256 = arith.addf %254, %255 : vector<4x32xf32>
    %cst_79 = arith.constant 1.000000e+00 : f32
    %257 = vector.broadcast %cst_79 : f32 to vector<4x32xf32>
    %258 = arith.subf %257, %251 : vector<4x32xf32>
    %259 = arith.mulf %258, %249 : vector<4x32xf32>
    %260 = arith.mulf %251, %201 : vector<4x32xf32>
    %261 = arith.addf %259, %260 : vector<4x32xf32>
    %c1_i32_80 = arith.constant 1 : i32
    %262 = arith.subi %c1_i32_80, %arg0 : i32
    %c5_i32_81 = arith.constant 5 : i32
    %263 = arith.muli %262, %c5_i32_81 : i32
    %c4_i32_82 = arith.constant 4 : i32
    %264 = arith.subi %c4_i32_82, %c3_i32 : i32
    %265 = arith.addi %263, %264 : i32
    %c8_i32_83 = arith.constant 8 : i32
    %266 = arith.cmpi slt, %265, %c8_i32_83 : i32
    %267 = arith.select %266, %261, %201 : vector<4x32xf32>
    %268 = arith.index_cast %c3_i32 : i32 to index
    %c0_84 = arith.constant 0 : index
    %c0_85 = arith.constant 0 : index
    %269 = vector.load %arg7[%268, %c0_84, %c0_85] : memref<5x4x32xf32, #tpu.memory_space<vmem>>, vector<1x4x32xf32>
    %270 = vector.shape_cast %269 : vector<1x4x32xf32> to vector<4x32xf32>
    %271 = vector.shape_cast %256 : vector<4x32xf32> to vector<1x4x32xf32>
    tpu.vector_store %arg7[%268, %c0_84, %c0_85], %271 {strides = array<i32>} : memref<5x4x32xf32, #tpu.memory_space<vmem>>, vector<1x4x32xf32>,
    %c4_i32_86 = arith.constant 4 : i32
    %272 = arith.subi %c4_i32_86, %c3_i32 : i32
    %273 = arith.index_cast %272 : i32 to index
    %c0_87 = arith.constant 0 : index
    %c0_88 = arith.constant 0 : index
    %274 = vector.load %arg8[%273, %c0_87, %c0_88] : memref<5x4x32xf32, #tpu.memory_space<vmem>>, vector<1x4x32xf32>
    %275 = vector.shape_cast %274 : vector<1x4x32xf32> to vector<4x32xf32>
    %276 = vector.shape_cast %267 : vector<4x32xf32> to vector<1x4x32xf32>
    tpu.vector_store %arg8[%273, %c0_87, %c0_88], %276 {strides = array<i32>} : memref<5x4x32xf32, #tpu.memory_space<vmem>>, vector<1x4x32xf32>,
    %c4_i32_89 = arith.constant 4 : i32
    %277 = arith.index_cast %c4_i32_89 : i32 to index
    %c0_90 = arith.constant 0 : index
    %c0_91 = arith.constant 0 : index
    %278 = vector.load %arg1[%277, %c0_90, %c0_91] : memref<5x4x96xf32, #tpu.memory_space<vmem>>, vector<1x4x96xf32>
    %279 = vector.shape_cast %278 : vector<1x4x96xf32> to vector<4x96xf32>
    %c4_i32_92 = arith.constant 4 : i32
    %280 = arith.subi %c4_i32_92, %c4_i32_89 : i32
    %281 = arith.index_cast %280 : i32 to index
    %c0_93 = arith.constant 0 : index
    %c0_94 = arith.constant 0 : index
    %282 = vector.load %arg2[%281, %c0_93, %c0_94] : memref<5x4x96xf32, #tpu.memory_space<vmem>>, vector<1x4x96xf32>
    %283 = vector.shape_cast %282 : vector<1x4x96xf32> to vector<4x96xf32>
    %cst_95 = arith.constant dense<0.000000e+00> : vector<4x96xf32>
    %284 = tpu.matmul %256, %3, %cst_95 {dimension_numbers = #tpu.dot_dimension_numbers<[1], [0], [0], [1], [0, 0, 1, 1], [], []>} : vector<4x32xf32>, vector<32x96xf32>, vector<4x96xf32> -> vector<4x96xf32>
    %cst_96 = arith.constant dense<0.000000e+00> : vector<4x96xf32>
    %285 = tpu.matmul %267, %4, %cst_96 {dimension_numbers = #tpu.dot_dimension_numbers<[1], [0], [0], [1], [0, 0, 1, 1], [], []>} : vector<4x32xf32>, vector<32x96xf32>, vector<4x96xf32> -> vector<4x96xf32>
    %286 = vector.extract_strided_slice %279 {offsets = [0, 0], sizes = [4, 64], strides = [1, 1]} : vector<4x96xf32> to vector<4x64xf32>
    %287 = vector.extract_strided_slice %284 {offsets = [0, 0], sizes = [4, 64], strides = [1, 1]} : vector<4x96xf32> to vector<4x64xf32>
    %288 = arith.addf %286, %287 : vector<4x64xf32>
    %289 = arith.negf %288 : vector<4x64xf32>
    %290 = math.exp %289 : vector<4x64xf32>
    %cst_97 = arith.constant 1.000000e+00 : f32
    %291 = vector.broadcast %cst_97 : f32 to vector<4x64xf32>
    %292 = arith.addf %291, %290 : vector<4x64xf32>
    %293 = arith.divf %291, %292 : vector<4x64xf32>
    %294 = vector.extract_strided_slice %283 {offsets = [0, 0], sizes = [4, 64], strides = [1, 1]} : vector<4x96xf32> to vector<4x64xf32>
    %295 = vector.extract_strided_slice %285 {offsets = [0, 0], sizes = [4, 64], strides = [1, 1]} : vector<4x96xf32> to vector<4x64xf32>
    %296 = arith.addf %294, %295 : vector<4x64xf32>
    %297 = arith.negf %296 : vector<4x64xf32>
    %298 = math.exp %297 : vector<4x64xf32>
    %cst_98 = arith.constant 1.000000e+00 : f32
    %299 = vector.broadcast %cst_98 : f32 to vector<4x64xf32>
    %300 = arith.addf %299, %298 : vector<4x64xf32>
    %301 = arith.divf %299, %300 : vector<4x64xf32>
    %302 = vector.extract_strided_slice %279 {offsets = [0, 64], sizes = [4, 32], strides = [1, 1]} : vector<4x96xf32> to vector<4x32xf32>
    %303 = vector.extract_strided_slice %293 {offsets = [0, 0], sizes = [4, 32], strides = [1, 1]} : vector<4x64xf32> to vector<4x32xf32>
    %304 = vector.extract_strided_slice %284 {offsets = [0, 64], sizes = [4, 32], strides = [1, 1]} : vector<4x96xf32> to vector<4x32xf32>
    %305 = arith.addf %304, %7 : vector<4x32xf32>
    %306 = arith.mulf %303, %305 : vector<4x32xf32>
    %307 = arith.addf %302, %306 : vector<4x32xf32>
    %308 = math.tanh %307 : vector<4x32xf32>
    %309 = vector.extract_strided_slice %283 {offsets = [0, 64], sizes = [4, 32], strides = [1, 1]} : vector<4x96xf32> to vector<4x32xf32>
    %310 = vector.extract_strided_slice %301 {offsets = [0, 0], sizes = [4, 32], strides = [1, 1]} : vector<4x64xf32> to vector<4x32xf32>
    %311 = vector.extract_strided_slice %285 {offsets = [0, 64], sizes = [4, 32], strides = [1, 1]} : vector<4x96xf32> to vector<4x32xf32>
    %312 = arith.addf %311, %10 : vector<4x32xf32>
    %313 = arith.mulf %310, %312 : vector<4x32xf32>
    %314 = arith.addf %309, %313 : vector<4x32xf32>
    %315 = math.tanh %314 : vector<4x32xf32>
    %316 = vector.extract_strided_slice %293 {offsets = [0, 32], sizes = [4, 32], strides = [1, 1]} : vector<4x64xf32> to vector<4x32xf32>
    %317 = vector.extract_strided_slice %301 {offsets = [0, 32], sizes = [4, 32], strides = [1, 1]} : vector<4x64xf32> to vector<4x32xf32>
    %cst_99 = arith.constant 1.000000e+00 : f32
    %318 = vector.broadcast %cst_99 : f32 to vector<4x32xf32>
    %319 = arith.subf %318, %316 : vector<4x32xf32>
    %320 = arith.mulf %319, %308 : vector<4x32xf32>
    %321 = arith.mulf %316, %256 : vector<4x32xf32>
    %322 = arith.addf %320, %321 : vector<4x32xf32>
    %cst_100 = arith.constant 1.000000e+00 : f32
    %323 = vector.broadcast %cst_100 : f32 to vector<4x32xf32>
    %324 = arith.subf %323, %317 : vector<4x32xf32>
    %325 = arith.mulf %324, %315 : vector<4x32xf32>
    %326 = arith.mulf %317, %267 : vector<4x32xf32>
    %327 = arith.addf %325, %326 : vector<4x32xf32>
    %c1_i32_101 = arith.constant 1 : i32
    %328 = arith.subi %c1_i32_101, %arg0 : i32
    %c5_i32_102 = arith.constant 5 : i32
    %329 = arith.muli %328, %c5_i32_102 : i32
    %c4_i32_103 = arith.constant 4 : i32
    %330 = arith.subi %c4_i32_103, %c4_i32_89 : i32
    %331 = arith.addi %329, %330 : i32
    %c8_i32_104 = arith.constant 8 : i32
    %332 = arith.cmpi slt, %331, %c8_i32_104 : i32
    %333 = arith.select %332, %327, %267 : vector<4x32xf32>
    %334 = arith.index_cast %c4_i32_89 : i32 to index
    %c0_105 = arith.constant 0 : index
    %c0_106 = arith.constant 0 : index
    %335 = vector.load %arg7[%334, %c0_105, %c0_106] : memref<5x4x32xf32, #tpu.memory_space<vmem>>, vector<1x4x32xf32>
    %336 = vector.shape_cast %335 : vector<1x4x32xf32> to vector<4x32xf32>
    %337 = vector.shape_cast %322 : vector<4x32xf32> to vector<1x4x32xf32>
    tpu.vector_store %arg7[%334, %c0_105, %c0_106], %337 {strides = array<i32>} : memref<5x4x32xf32, #tpu.memory_space<vmem>>, vector<1x4x32xf32>,
    %c4_i32_107 = arith.constant 4 : i32
    %338 = arith.subi %c4_i32_107, %c4_i32_89 : i32
    %339 = arith.index_cast %338 : i32 to index
    %c0_108 = arith.constant 0 : index
    %c0_109 = arith.constant 0 : index
    %340 = vector.load %arg8[%339, %c0_108, %c0_109] : memref<5x4x32xf32, #tpu.memory_space<vmem>>, vector<1x4x32xf32>
    %341 = vector.shape_cast %340 : vector<1x4x32xf32> to vector<4x32xf32>
    %342 = vector.shape_cast %333 : vector<4x32xf32> to vector<1x4x32xf32>
    tpu.vector_store %arg8[%339, %c0_108, %c0_109], %342 {strides = array<i32>} : memref<5x4x32xf32, #tpu.memory_space<vmem>>, vector<1x4x32xf32>,
    %c5_i32_110 = arith.constant 5 : i32
    %c0_111 = arith.constant 0 : index
    %c0_112 = arith.constant 0 : index
    %343 = vector.load %arg9[%c0_111, %c0_112] : memref<4x32xf32, #tpu.memory_space<vmem>>, vector<4x32xf32>
    tpu.vector_store %arg9[%c0_111, %c0_112], %322 {strides = array<i32>} : memref<4x32xf32, #tpu.memory_space<vmem>>, vector<4x32xf32>,
    %c0_113 = arith.constant 0 : index
    %c0_114 = arith.constant 0 : index
    %344 = vector.load %arg10[%c0_113, %c0_114] : memref<4x32xf32, #tpu.memory_space<vmem>>, vector<4x32xf32>
    tpu.vector_store %arg10[%c0_113, %c0_114], %333 {strides = array<i32>} : memref<4x32xf32, #tpu.memory_space<vmem>>, vector<4x32xf32>,
    return
  }
  func.func @transform_0(%arg0: i32) -> (i32, i32, i32) {
    %c0_i32 = arith.constant 0 : i32
    %c0_i32_0 = arith.constant 0 : i32
    %c0_i32_1 = arith.constant 0 : i32
    return %arg0, %c0_i32, %c0_i32_0 : i32, i32, i32
  }
  func.func @transform_1(%arg0: i32) -> (i32, i32, i32) {
    %c1_i32 = arith.constant 1 : i32
    %0 = arith.subi %c1_i32, %arg0 : i32
    %c0_i32 = arith.constant 0 : i32
    %c0_i32_0 = arith.constant 0 : i32
    %c0_i32_1 = arith.constant 0 : i32
    return %0, %c0_i32, %c0_i32_0 : i32, i32, i32
  }
  func.func @transform_2(%arg0: i32) -> (i32, i32) {
    %c0_i32 = arith.constant 0 : i32
    %c0_i32_0 = arith.constant 0 : i32
    %c0_i32_1 = arith.constant 0 : i32
    return %c0_i32, %c0_i32_0 : i32, i32
  }
  func.func @transform_3(%arg0: i32) -> (i32, i32) {
    %c0_i32 = arith.constant 0 : i32
    %c0_i32_0 = arith.constant 0 : i32
    %c0_i32_1 = arith.constant 0 : i32
    return %c0_i32, %c0_i32_0 : i32, i32
  }
  func.func @transform_4(%arg0: i32) -> (i32, i32) {
    %c0_i32 = arith.constant 0 : i32
    %c0_i32_0 = arith.constant 0 : i32
    %c0_i32_1 = arith.constant 0 : i32
    return %c0_i32, %c0_i32_0 : i32, i32
  }
  func.func @transform_5(%arg0: i32) -> (i32, i32) {
    %c0_i32 = arith.constant 0 : i32
    %c0_i32_0 = arith.constant 0 : i32
    %c0_i32_1 = arith.constant 0 : i32
    return %c0_i32, %c0_i32_0 : i32, i32
  }
  func.func @transform_6(%arg0: i32) -> (i32, i32, i32) {
    %c0_i32 = arith.constant 0 : i32
    %c0_i32_0 = arith.constant 0 : i32
    %c0_i32_1 = arith.constant 0 : i32
    return %arg0, %c0_i32, %c0_i32_0 : i32, i32, i32
  }
  func.func @transform_7(%arg0: i32) -> (i32, i32, i32) {
    %c1_i32 = arith.constant 1 : i32
    %0 = arith.subi %c1_i32, %arg0 : i32
    %c0_i32 = arith.constant 0 : i32
    %c0_i32_0 = arith.constant 0 : i32
    %c0_i32_1 = arith.constant 0 : i32
    return %0, %c0_i32, %c0_i32_0 : i32, i32, i32
  }
}

</mosaic_0001>

<llo_original>
// kernel: encoder_forward.1
$region0: #{encoder_forward.1}
  #allocation0 [shape = 'u32[]', space=smem, size = 0x4, offset = 0x4, fixed_abs, tag = 'smem constant byte address 0x4 - core index']
  #allocation1 [shape = 'u32[72,128]{1,0:T(1,128)}', space=vmem, size = 0x9000, scoped, tag = 'internal scratch']
  #allocation2 [shape = 'f32[4,32]{1,0:T(4,128)}', space=vmem, size = 0x800, scoped, tag = 'scratch operand']
  #allocation3 [shape = 'f32[4,32]{1,0:T(4,128)}', space=vmem, size = 0x800, scoped, tag = 'scratch operand']
  %s0 = inlined_call_operand.vmem [shape: f32[10,4,96], index: 0, kind: input, shape index: {}]
  %s1 = inlined_call_operand.vmem [shape: f32[10,4,96], index: 1, kind: input, shape index: {}]
  %s2 = inlined_call_operand.vmem [shape: f32[32,96], index: 2, kind: input, shape index: {}]
  %s3 = inlined_call_operand.vmem [shape: f32[32,96], index: 3, kind: input, shape index: {}]
  %s4 = inlined_call_operand.vmem [shape: f32[1,32], index: 4, kind: input, shape index: {}]
  %s5 = inlined_call_operand.vmem [shape: f32[1,32], index: 5, kind: input, shape index: {}]
  %s6 = inlined_call_operand.vmem [shape: f32[10,4,32], index: 6, kind: output, shape index: {0}]
  %s7 = inlined_call_operand.vmem [shape: f32[10,4,32], index: 7, kind: output, shape index: {1}]
  %8 = xla_tuple %s6, %s7
  %s9 = sld [smem:[#allocation0]]
  $region69: #{encoder_forward.1} parent=0
    _
  %s11 = ssub.s32 1, %s9
  %s12 = scalar_select 0, %s11, %s9
  loop: start=0, step=1, limit=4
  $region2: #{encoder_forward.1} parent=0 // loop_pre_header
    _
  $region3: #{encoder_forward.1} parent=0 // loop_header
    %s14 = sphi 0, %s18
    %p15 = scmp.ge.s32.totalorder %s14, 4
    %s24 = sphi 0, %s26
    %s27 = sphi 0, %s24
    %s28 = sphi 0, %s27
    %s44 = sphi 0, %s28
    %s52 = sphi 0, %s54
    %s55 = sphi 0, %s52
    %s56 = sphi 0, %s55
    %s72 = sphi 0, %s56
    %s76 = sphi 0, %s76
    %s78 = sphi 0, %s76
    %s79 = sphi 0, %s78
    %s93 = sphi 0, %s79
    %s97 = sphi 0, %s97
    %s99 = sphi 0, %s97
    %s100 = sphi 0, %s99
    %s114 = sphi 0, %s100
    %s118 = sphi 0, %s118
    %s120 = sphi 0, %s118
    %s121 = sphi 0, %s120
    %s135 = sphi 0, %s121
    %s139 = sphi 0, %s139
    %s141 = sphi 0, %s139
    %s142 = sphi 0, %s141
    %s156 = sphi 0, %s142
    %s162 = sphi 0, %s164
    %s165 = sphi 0, %s162
    %s166 = sphi 0, %s165
    %s182 = sphi 0, %s166
    %s190 = sphi 0, %s192
    %s193 = sphi 0, %s190
    %s194 = sphi 0, %s193
    %s210 = sphi 0, %s194
  $region4: #{encoder_forward.1} parent=0 // loop_header_branch
    %17 = sbr.rel (%p15) target = $region8
  $region5: #{encoder_forward.1} parent=0 // loop_body
    %s19 = ssub.s32 %s14, 1
    %s20 = ssub.s32 %s14, 2
    %s21 = sadd.s32 %s14, 1
    %s22 = ssub.s32 %s14, %s21
    %p23 = scmp.eq.s32.totalorder %s22, 0
    %s25 = sadd.s32 %s24, 1
    %s26 = scalar_select %p23, %s24, %s25
    %p29 = pneg %p23
    %p30 = scmp.eq.s32.totalorder %s14, 1
    %p31 = por %p29, %p30
    %p32 = scmp.ne.s32.totalorder %s24, %s27
    %p33 = scmp.eq.s32.totalorder %s14, 0
    %p34 = por %p32, %p33
    %p35 = scmp.ne.s32.totalorder %s24, %s27
    %p36 = scmp.eq.s32.totalorder %s19, 1
    %p37 = por %p35, %p36
    %p38 = scmp.ne.s32.totalorder %s27, %s28
    %p39 = scmp.eq.s32.totalorder %s19, 0
    %p40 = por %p38, %p39
    %p41 = scmp.ne.s32.totalorder %s27, %s28
    %p42 = scmp.eq.s32.totalorder %s20, 1
    %p43 = por %p41, %p42
    %p45 = scmp.ne.s32.totalorder %s28, %s44
    %p46 = scmp.eq.s32.totalorder %s20, 0
    %p47 = por %p45, %p46
    %s48 = ssub.s32 1, %s14
    %s49 = ssub.s32 1, %s21
    %s50 = ssub.s32 %s48, %s49
    %p51 = scmp.eq.s32.totalorder %s50, 0
    %s53 = sadd.s32 %s52, 1
    %s54 = scalar_select %p51, %s52, %s53
    %p57 = pneg %p51
    %p58 = scmp.eq.s32.totalorder %s14, 1
    %p59 = por %p57, %p58
    %p60 = scmp.ne.s32.totalorder %s52, %s55
    %p61 = scmp.eq.s32.totalorder %s14, 0
    %p62 = por %p60, %p61
    %p63 = scmp.ne.s32.totalorder %s52, %s55
    %p64 = scmp.eq.s32.totalorder %s19, 1
    %p65 = por %p63, %p64
    %p66 = scmp.ne.s32.totalorder %s55, %s56
    %p67 = scmp.eq.s32.totalorder %s19, 0
    %p68 = por %p66, %p67
    %p69 = scmp.ne.s32.totalorder %s55, %s56
    %p70 = scmp.eq.s32.totalorder %s20, 1
    %p71 = por %p69, %p70
    %p73 = scmp.ne.s32.totalorder %s56, %s72
    %p74 = scmp.eq.s32.totalorder %s20, 0
    %p75 = por %p73, %p74
    %s77 = sadd.s32 %s76, 1
    %p80 = scmp.eq.s32.totalorder %s14, 1
    %p81 = scmp.ne.s32.totalorder %s76, %s78
    %p82 = scmp.eq.s32.totalorder %s14, 0
    %p83 = por %p81, %p82
    %p84 = scmp.ne.s32.totalorder %s76, %s78
    %p85 = scmp.eq.s32.totalorder %s19, 1
    %p86 = por %p84, %p85
    %p87 = scmp.ne.s32.totalorder %s78, %s79
    %p88 = scmp.eq.s32.totalorder %s19, 0
    %p89 = por %p87, %p88
    %p90 = scmp.ne.s32.totalorder %s78, %s79
    %p91 = scmp.eq.s32.totalorder %s20, 1
    %p92 = por %p90, %p91
    %p94 = scmp.ne.s32.totalorder %s79, %s93
    %p95 = scmp.eq.s32.totalorder %s20, 0
    %p96 = por %p94, %p95
    %s98 = sadd.s32 %s97, 1
    %p101 = scmp.eq.s32.totalorder %s14, 1
    %p102 = scmp.ne.s32.totalorder %s97, %s99
    %p103 = scmp.eq.s32.totalorder %s14, 0
    %p104 = por %p102, %p103
    %p105 = scmp.ne.s32.totalorder %s97, %s99
    %p106 = scmp.eq.s32.totalorder %s19, 1
    %p107 = por %p105, %p106
    %p108 = scmp.ne.s32.totalorder %s99, %s100
    %p109 = scmp.eq.s32.totalorder %s19, 0
    %p110 = por %p108, %p109
    %p111 = scmp.ne.s32.totalorder %s99, %s100
    %p112 = scmp.eq.s32.totalorder %s20, 1
    %p113 = por %p111, %p112
    %p115 = scmp.ne.s32.totalorder %s100, %s114
    %p116 = scmp.eq.s32.totalorder %s20, 0
    %p117 = por %p115, %p116
    %s119 = sadd.s32 %s118, 1
    %p122 = scmp.eq.s32.totalorder %s14, 1
    %p123 = scmp.ne.s32.totalorder %s118, %s120
    %p124 = scmp.eq.s32.totalorder %s14, 0
    %p125 = por %p123, %p124
    %p126 = scmp.ne.s32.totalorder %s118, %s120
    %p127 = scmp.eq.s32.totalorder %s19, 1
    %p128 = por %p126, %p127
    %p129 = scmp.ne.s32.totalorder %s120, %s121
    %p130 = scmp.eq.s32.totalorder %s19, 0
    %p131 = por %p129, %p130
    %p132 = scmp.ne.s32.totalorder %s120, %s121
    %p133 = scmp.eq.s32.totalorder %s20, 1
    %p134 = por %p132, %p133
    %p136 = scmp.ne.s32.totalorder %s121, %s135
    %p137 = scmp.eq.s32.totalorder %s20, 0
    %p138 = por %p136, %p137
    %s140 = sadd.s32 %s139, 1
    %p143 = scmp.eq.s32.totalorder %s14, 1
    %p144 = scmp.ne.s32.totalorder %s139, %s141
    %p145 = scmp.eq.s32.totalorder %s14, 0
    %p146 = por %p144, %p145
    %p147 = scmp.ne.s32.totalorder %s139, %s141
    %p148 = scmp.eq.s32.totalorder %s19, 1
    %p149 = por %p147, %p148
    %p150 = scmp.ne.s32.totalorder %s141, %s142
    %p151 = scmp.eq.s32.totalorder %s19, 0
    %p152 = por %p150, %p151
    %p153 = scmp.ne.s32.totalorder %s141, %s142
    %p154 = scmp.eq.s32.totalorder %s20, 1
    %p155 = por %p153, %p154
    %p157 = scmp.ne.s32.totalorder %s142, %s156
    %p158 = scmp.eq.s32.totalorder %s20, 0
    %p159 = por %p157, %p158
    %s160 = ssub.s32 %s14, %s21
    %p161 = scmp.eq.s32.totalorder %s160, 0
    %s163 = sadd.s32 %s162, 1
    %s164 = scalar_select %p161, %s162, %s163
    %p167 = pneg %p161
    %p168 = scmp.eq.s32.totalorder %s14, 1
    %p169 = por %p167, %p168
    %p170 = scmp.ne.s32.totalorder %s162, %s165
    %p171 = scmp.eq.s32.totalorder %s14, 0
    %p172 = por %p170, %p171
    %p173 = scmp.ne.s32.totalorder %s162, %s165
    %p174 = scmp.eq.s32.totalorder %s19, 1
    %p175 = por %p173, %p174
    %p176 = scmp.ne.s32.totalorder %s165, %s166
    %p177 = scmp.eq.s32.totalorder %s19, 0
    %p178 = por %p176, %p177
    %p179 = scmp.ne.s32.totalorder %s165, %s166
    %p180 = scmp.eq.s32.totalorder %s20, 1
    %p181 = por %p179, %p180
    %p183 = scmp.ne.s32.totalorder %s166, %s182
    %p184 = scmp.eq.s32.totalorder %s20, 0
    %p185 = por %p183, %p184
    %s186 = ssub.s32 1, %s14
    %s187 = ssub.s32 1, %s21
    %s188 = ssub.s32 %s186, %s187
    %p189 = scmp.eq.s32.totalorder %s188, 0
    %s191 = sadd.s32 %s190, 1
    %s192 = scalar_select %p189, %s190, %s191
    %p195 = pneg %p189
    %p196 = scmp.eq.s32.totalorder %s14, 1
    %p197 = por %p195, %p196
    %p198 = scmp.ne.s32.totalorder %s190, %s193
    %p199 = scmp.eq.s32.totalorder %s14, 0
    %p200 = por %p198, %p199
    %p201 = scmp.ne.s32.totalorder %s190, %s193
    %p202 = scmp.eq.s32.totalorder %s19, 1
    %p203 = por %p201, %p202
    %p204 = scmp.ne.s32.totalorder %s193, %s194
    %p205 = scmp.eq.s32.totalorder %s19, 0
    %p206 = por %p204, %p205
    %p207 = scmp.ne.s32.totalorder %s193, %s194
    %p208 = scmp.eq.s32.totalorder %s20, 1
    %p209 = por %p207, %p208
    %p211 = scmp.ne.s32.totalorder %s194, %s210
    %p212 = scmp.eq.s32.totalorder %s20, 0
    %p213 = por %p211, %p212
    %p214 = scmp.le.s32.totalorder 1, %s14
    %p215 = scmp.lt.s32.totalorder %s14, 3
    %p216 = pnand %p214, %p215
    %p217 = pneg %p216
    // Predicated region
    $region9: #{encoder_forward.1} parent=5 // pred_check
      _
    $region10: #{encoder_forward.1} parent=5 // pred_check_branch
      %219 = sbr.rel (%p216) target = $region12
    $region11: #{encoder_forward.1} parent=5 // pred_region
      %s220 = ssub.s32 %s14, 1
      // Predicated region
      $region13: #{encoder_forward.1} parent=11 // pred_check
        %p221 = pneg %p89
      $region14: #{encoder_forward.1} parent=11 // pred_check_branch
        %223 = sbr.rel (%p221) target = $region16
      $region15: #{encoder_forward.1} parent=11 // pred_region
        _
      $region16: #{encoder_forward.1} parent=11 // pred_fallthru
        _
      // Predicated region
      $region17: #{encoder_forward.1} parent=11 // pred_check
        %p224 = pneg %p110
      $region18: #{encoder_forward.1} parent=11 // pred_check_branch
        %226 = sbr.rel (%p224) target = $region20
      $region19: #{encoder_forward.1} parent=11 // pred_region
        _
      $region20: #{encoder_forward.1} parent=11 // pred_fallthru
        _
      // Predicated region
      $region21: #{encoder_forward.1} parent=11 // pred_check
        %p227 = pneg %p131
      $region22: #{encoder_forward.1} parent=11 // pred_check_branch
        %229 = sbr.rel (%p227) target = $region24
      $region23: #{encoder_forward.1} parent=11 // pred_region
        _
      $region24: #{encoder_forward.1} parent=11 // pred_fallthru
        _
      // Predicated region
      $region25: #{encoder_forward.1} parent=11 // pred_check
        %p230 = pneg %p152
      $region26: #{encoder_forward.1} parent=11 // pred_check_branch
        %232 = sbr.rel (%p230) target = $region28
      $region27: #{encoder_forward.1} parent=11 // pred_region
        _
      $region28: #{encoder_forward.1} parent=11 // pred_fallthru
        _
    $region12: #{encoder_forward.1} parent=5 // pred_fallthru
      _
    %p233 = scmp.lt.s32.totalorder %s14, 2
    // Predicated region
    $region29: #{encoder_forward.1} parent=5 // pred_check
      %p234 = pneg %p233
    $region30: #{encoder_forward.1} parent=5 // pred_check_branch
      %236 = sbr.rel (%p234) target = $region32
    $region31: #{encoder_forward.1} parent=5 // pred_region
      // Predicated region
      $region33: #{encoder_forward.1} parent=31 // pred_check
        %p237 = pneg %p34
      $region34: #{encoder_forward.1} parent=31 // pred_check_branch
        %239 = sbr.rel (%p237) target = $region36
      $region35: #{encoder_forward.1} parent=31 // pred_region
        %s240 = smul.u32 5, %s14
        %p241 = scmp.lt.s32.totalorder %s240, 9
        %s242 = scalar_select %p241, %s240, 9
        %s243 = smul.addr %s242, 4
        %s244 = scalar_lea.vmem %s0, %s243
        %s245 = smul.u32 5, %s14
      $region36: #{encoder_forward.1} parent=31 // pred_fallthru
        _
      // Predicated region
      $region37: #{encoder_forward.1} parent=31 // pred_check
        %p246 = pneg %p62
      $region38: #{encoder_forward.1} parent=31 // pred_check_branch
        %248 = sbr.rel (%p246) target = $region40
      $region39: #{encoder_forward.1} parent=31 // pred_region
        %s249 = ssub.s32 1, %s14
        %s250 = smul.u32 5, %s249
        %p251 = scmp.lt.s32.totalorder %s250, 9
        %s252 = scalar_select %p251, %s250, 9
        %s253 = smul.addr %s252, 4
        %s254 = scalar_lea.vmem %s1, %s253
        %s255 = ssub.s32 1, %s14
        %s256 = smul.u32 5, %s255
      $region40: #{encoder_forward.1} parent=31 // pred_fallthru
        _
    $region32: #{encoder_forward.1} parent=5 // pred_fallthru
      _
    %p257 = scmp.le.s32.totalorder 1, %s14
    %p258 = scmp.lt.s32.totalorder %s14, 3
    %p259 = pnand %p257, %p258
    %p260 = pneg %p259
    // Predicated region
    $region41: #{encoder_forward.1} parent=5 // pred_check
      _
    $region42: #{encoder_forward.1} parent=5 // pred_check_branch
      %262 = sbr.rel (%p259) target = $region44
    $region43: #{encoder_forward.1} parent=5 // pred_region
      %s263 = ssub.s32 %s14, 1
      %s264 = smul.u32 5, %s19
      %p265 = scmp.lt.s32.totalorder %s264, 9
      %s266 = scalar_select %p265, %s264, 9
      %s267 = smul.addr %s266, 4
      %s268 = scalar_lea.vmem %s0, %s267
      %p269 = pneg %p40
      %p270 = pneg %p37
      %s271 = ssub.s32 1, %s19
      %s272 = smul.u32 5, %s271
      %p273 = scmp.lt.s32.totalorder %s272, 9
      %s274 = scalar_select %p273, %s272, 9
      %s275 = smul.addr %s274, 4
      %s276 = scalar_lea.vmem %s1, %s275
      %p277 = pneg %p68
      %p278 = pneg %p65
      %p279 = pneg %p89
      %p280 = pneg %p86
      %p281 = pneg %p110
      %p282 = pneg %p107
      %p283 = pneg %p131
      %p284 = pneg %p128
      %p285 = pneg %p152
      %p286 = pneg %p149
      %p287 = pneg %p178
      %p288 = pneg %p175
      %s289 = smul.u32 5, %s19
      %p290 = scmp.lt.s32.totalorder %s289, 9
      %s291 = scalar_select %p290, %s289, 9
      %s292 = smul.addr %s291, 4
      %s293 = scalar_lea.vmem %s6, %s292
      %p294 = pneg %p206
      %p295 = pneg %p203
      %s296 = ssub.s32 1, %s19
      %s297 = smul.u32 5, %s296
      %p298 = scmp.lt.s32.totalorder %s297, 9
      %s299 = scalar_select %p298, %s297, 9
      %s300 = smul.addr %s299, 4
      %s301 = scalar_lea.vmem %s7, %s300
      %s302 = smul.u32 5, %s19
      %p303 = scmp.lt.s32.totalorder %s302, 9
      %s304 = scalar_select %p303, %s302, 9
      %s305 = smul.addr %s304, 4
      %s306 = scalar_lea.vmem %s0, %s305
      %s307 = smul.u32 5, %s19
      %s308 = ssub.s32 1, %s19
      %s309 = smul.u32 5, %s308
      %p310 = scmp.lt.s32.totalorder %s309, 9
      %s311 = scalar_select %p310, %s309, 9
      %s312 = smul.addr %s311, 4
      %s313 = scalar_lea.vmem %s1, %s312
      %s314 = ssub.s32 1, %s19
      %s315 = smul.u32 5, %s314
      %s316 = smul.u32 5, %s19
      %p317 = scmp.lt.s32.totalorder %s316, 9
      %s318 = scalar_select %p317, %s316, 9
      %s319 = smul.addr %s318, 4
      %s320 = scalar_lea.vmem %s6, %s319
      %s321 = smul.u32 5, %s19
      %s322 = ssub.s32 1, %s19
      %s323 = smul.u32 5, %s322
      %p324 = scmp.lt.s32.totalorder %s323, 9
      %s325 = scalar_select %p324, %s323, 9
      %s326 = smul.addr %s325, 4
      %s327 = scalar_lea.vmem %s7, %s326
      %s328 = ssub.s32 1, %s19
      %s329 = smul.u32 5, %s328
      %p330 = scmp.eq.s32.totalorder %s19, 0
      // Predicated region
      $region45: #{encoder_forward.1} parent=43 // pred_check
        %p331 = pneg %p330
      $region46: #{encoder_forward.1} parent=43 // pred_check_branch
        %333 = sbr.rel (%p331) target = $region48
      $region47: #{encoder_forward.1} parent=43 // pred_region
        %vm334 = vcmask 257024
        %335 = vst.msk [vmem:[#allocation2] sm:$0xf] %vm334, 0.0
        %336 = vst.msk [vmem:[#allocation3] sm:$0xf] %vm334, 0.0
      $region48: #{encoder_forward.1} parent=43 // pred_fallthru
        _
      %v337 = vld [vmem:[%s2] sm:$0xff]
      %v338 = vld [vmem:[%s2 + $0x8] sm:$0xff]
      %v339 = vld [vmem:[%s2 + $0x10] sm:$0xff]
      %v340 = vld [vmem:[%s2 + $0x18] sm:$0xff]
      %v341 = vld [vmem:[%s3] sm:$0xff]
      %v342 = vld [vmem:[%s3 + $0x8] sm:$0xff]
      %v343 = vld [vmem:[%s3 + $0x10] sm:$0xff]
      %v344 = vld [vmem:[%s3 + $0x18] sm:$0xff]
      %v345 = vld [vmem:[%s4] sm:$0x1]
      %v347 = vperm.slane %v345, 0
      %v348 = vld [vmem:[%s5] sm:$0x1]
      %v350 = vperm.slane %v348, 0
      %v351 = vld [vmem:[#allocation2] sm:$0xf]
      %v352 = vld [vmem:[#allocation3] sm:$0xf]
      %v353 = vld [vmem:[%s306] sm:$0xf]
      %s354 = scalar_lea.vmem %s313, 16
      %v355 = vld [vmem:[%s354] sm:$0xf]
      %vm356 = vcmask 261120
      %v358 = vsel %vm356, %v351, 0
      %360 = vmatpush.msra.mxu0 0.0
      %361 = vmatpush.msra.mxu0 0.0
      %362 = vmatpush.msra.mxu0 0.0
      %363 = vmatpush.msra.mxu0 0.0
      %364 = vmatpush.msra.mxu0 0.0
      %365 = vmatpush.msra.mxu0 0.0
      %366 = vmatpush.msra.mxu0 0.0
      %367 = vmatpush.msra.mxu0 0.0
      %368 = vmatpush.msra.mxu0 0.0
      %369 = vmatpush.msra.mxu0 0.0
      %370 = vmatpush.msra.mxu0 0.0
      %371 = vmatpush.msra.mxu0 0.0
      %372 = vmatpush.msra.mxu0 %v340
      %373 = vmatpush.msra.mxu0 %v339
      %374 = vmatpush.msra.mxu0 %v338
      %375 = vmatpush.msra.mxu0 %v337
      %376 = vmatmul.f32.gmra.mxu0 %v358
      %v377 = vpop.f32.mrf.mxu0
      %v378 = vadd.f32 0.0, %v377
      %379 = vdwg.mxu0
      %v381 = vsel %vm356, %v352, 0
      %383 = vmatpush.msra.mxu0 0.0
      %384 = vmatpush.msra.mxu0 0.0
      %385 = vmatpush.msra.mxu0 0.0
      %386 = vmatpush.msra.mxu0 0.0
      %387 = vmatpush.msra.mxu0 0.0
      %388 = vmatpush.msra.mxu0 0.0
      %389 = vmatpush.msra.mxu0 0.0
      %390 = vmatpush.msra.mxu0 0.0
      %391 = vmatpush.msra.mxu0 0.0
      %392 = vmatpush.msra.mxu0 0.0
      %393 = vmatpush.msra.mxu0 0.0
      %394 = vmatpush.msra.mxu0 0.0
      %395 = vmatpush.msra.mxu0 %v344
      %396 = vmatpush.msra.mxu0 %v343
      %397 = vmatpush.msra.mxu0 %v342
      %398 = vmatpush.msra.mxu0 %v341
      %399 = vmatmul.f32.gmra.mxu0 %v381
      %v400 = vpop.f32.mrf.mxu0
      %v401 = vadd.f32 0.0, %v400
      %402 = vdwg.mxu0
      %v403 = vadd.f32 %v353, %v378
      %v404 = vxor.u32 %v403, 2147483648
      %v405 = vmul.f32 %v404, 1.442695
      %v406 = vpow.pop %v405
      %v407 = vadd.f32 %v406, 1.0
      %v408 = vrcp.pop %v407
      %v409 = vmul.f32 %v407, %v408
      %v410 = vsub.f32 1.0, %v409
      %v411 = vmul.f32 %v408, %v410
      %v412 = vadd.f32 %v408, %v411
      %vm413 = vweird.f32 %v407
      %vm414 = vweird.f32 %v408
      %vm415 = vmor %vm413, %vm414
      %v416 = vsel %vm415, %v408, %v412
      %v417 = vand.u32 2147483647, %v407
      %vm418 = vcmp.eq.f32.partialorder %v417, 8.507059e+37
      %v419 = vand.u32 %v407, 2147483648
      %v420 = vor.u32 1.1754944e-38, %v419
      %v421 = vsel %vm418, %v420, %v416
      %v422 = vmul.f32 1.0, %v421
      %v423 = vadd.f32 %v355, %v401
      %v424 = vxor.u32 %v423, 2147483648
      %v425 = vmul.f32 %v424, 1.442695
      %v426 = vpow.pop %v425
      %v427 = vadd.f32 %v426, 1.0
      %v428 = vrcp.pop %v427
      %v429 = vmul.f32 %v427, %v428
      %v430 = vsub.f32 1.0, %v429
      %v431 = vmul.f32 %v428, %v430
      %v432 = vadd.f32 %v428, %v431
      %vm433 = vweird.f32 %v427
      %vm434 = vweird.f32 %v428
      %vm435 = vmor %vm433, %vm434
      %v436 = vsel %vm435, %v428, %v432
      %v437 = vand.u32 2147483647, %v427
      %vm438 = vcmp.eq.f32.partialorder %v437, 8.507059e+37
      %v439 = vand.u32 %v427, 2147483648
      %v440 = vor.u32 1.1754944e-38, %v439
      %v441 = vsel %vm438, %v440, %v436
      %v442 = vmul.f32 1.0, %v441
      %443 = vrot.lane.b32.xlu0 %v347, 64
      %v444 = vpop.permute.xlu0 %443
      %v446 = vadd.f32 %v378, %v444
      %448 = vrot.lane.b32.xlu0 %v446, 64
      %v449 = vpop.permute.xlu0 %448
      %v451 = vmul.f32 %v422, %v449
      %453 = vrot.lane.b32.xlu0 %v451, 64
      %v454 = vpop.permute.xlu0 %453
      %v456 = vadd.f32 %v353, %v454
      %v457 = vtanh.pop %v456
      %458 = vrot.lane.b32.xlu0 %v350, 64
      %v459 = vpop.permute.xlu0 %458
      %v461 = vadd.f32 %v401, %v459
      %463 = vrot.lane.b32.xlu0 %v461, 64
      %v464 = vpop.permute.xlu0 %463
      %v466 = vmul.f32 %v442, %v464
      %468 = vrot.lane.b32.xlu0 %v466, 64
      %v469 = vpop.permute.xlu0 %468
      %v471 = vadd.f32 %v355, %v469
      %v472 = vtanh.pop %v471
      %v473 = vsub.f32 1.0, %v422
      %475 = vrot.lane.b32.xlu0 %v457, 96
      %v476 = vpop.permute.xlu0 %475
      %v478 = vmul.f32 %v473, %v476
      %479 = vrot.lane.b32.xlu0 %v351, 32
      %v480 = vpop.permute.xlu0 %479
      %v482 = vmul.f32 %v422, %v480
      %v483 = vadd.f32 %v478, %v482
      %v484 = vsub.f32 1.0, %v442
      %486 = vrot.lane.b32.xlu0 %v472, 96
      %v487 = vpop.permute.xlu0 %486
      %v489 = vmul.f32 %v484, %v487
      %490 = vrot.lane.b32.xlu0 %v352, 32
      %v491 = vpop.permute.xlu0 %490
      %v493 = vmul.f32 %v442, %v491
      %v494 = vadd.f32 %v489, %v493
      %s495 = ssub.s32 1, %s19
      %s496 = smul.u32 %s495, 5
      %s497 = sadd.s32 %s496, 4
      %p498 = scmp.lt.s32.totalorder %s497, 8
      %s499 = scalar_select %p498, 1, 0
      %v500 = vstv %s499
      %vm501 = vcmp.eq.s32.totalorder %v500, 1
      %v502 = vsel %vm501, %v494, %v491
      %504 = vrot.lane.b32.xlu0 %v483, 96
      %v505 = vpop.permute.xlu0 %504
      %vm507 = vcmask 257024
      %508 = vst.msk [vmem:[%s320] sm:$0xf] %vm507, %v505
      %510 = vrot.lane.b32.xlu0 %v502, 96
      %v511 = vpop.permute.xlu0 %510
      %s513 = scalar_lea.vmem %s327, 16
      %514 = vst.msk [vmem:[%s513] sm:$0xf] %vm507, %v511
      %s515 = scalar_lea.vmem %s306, 4
      %v516 = vld [vmem:[%s515] sm:$0xf]
      %s517 = scalar_lea.vmem %s313, 12
      %v518 = vld [vmem:[%s517] sm:$0xf]
      %v519 = vsel %vm356, %v505, 0
      %521 = vmatpush.msra.mxu0 0.0
      %522 = vmatpush.msra.mxu0 0.0
      %523 = vmatpush.msra.mxu0 0.0
      %524 = vmatpush.msra.mxu0 0.0
      %525 = vmatpush.msra.mxu0 0.0
      %526 = vmatpush.msra.mxu0 0.0
      %527 = vmatpush.msra.mxu0 0.0
      %528 = vmatpush.msra.mxu0 0.0
      %529 = vmatpush.msra.mxu0 0.0
      %530 = vmatpush.msra.mxu0 0.0
      %531 = vmatpush.msra.mxu0 0.0
      %532 = vmatpush.msra.mxu0 0.0
      %533 = vmatpush.msra.mxu0 %v340
      %534 = vmatpush.msra.mxu0 %v339
      %535 = vmatpush.msra.mxu0 %v338
      %536 = vmatpush.msra.mxu0 %v337
      %537 = vmatmul.f32.gmra.mxu0 %v519
      %v538 = vpop.f32.mrf.mxu0
      %v539 = vadd.f32 0.0, %v538
      %540 = vdwg.mxu0
      %v541 = vsel %vm356, %v511, 0
      %543 = vmatpush.msra.mxu0 0.0
      %544 = vmatpush.msra.mxu0 0.0
      %545 = vmatpush.msra.mxu0 0.0
      %546 = vmatpush.msra.mxu0 0.0
      %547 = vmatpush.msra.mxu0 0.0
      %548 = vmatpush.msra.mxu0 0.0
      %549 = vmatpush.msra.mxu0 0.0
      %550 = vmatpush.msra.mxu0 0.0
      %551 = vmatpush.msra.mxu0 0.0
      %552 = vmatpush.msra.mxu0 0.0
      %553 = vmatpush.msra.mxu0 0.0
      %554 = vmatpush.msra.mxu0 0.0
      %555 = vmatpush.msra.mxu0 %v344
      %556 = vmatpush.msra.mxu0 %v343
      %557 = vmatpush.msra.mxu0 %v342
      %558 = vmatpush.msra.mxu0 %v341
      %559 = vmatmul.f32.gmra.mxu0 %v541
      %v560 = vpop.f32.mrf.mxu0
      %v561 = vadd.f32 0.0, %v560
      %562 = vdwg.mxu0
      %v563 = vadd.f32 %v516, %v539
      %v564 = vxor.u32 %v563, 2147483648
      %v565 = vmul.f32 %v564, 1.442695
      %v566 = vpow.pop %v565
      %v567 = vadd.f32 %v566, 1.0
      %v568 = vrcp.pop %v567
      %v569 = vmul.f32 %v567, %v568
      %v570 = vsub.f32 1.0, %v569
      %v571 = vmul.f32 %v568, %v570
      %v572 = vadd.f32 %v568, %v571
      %vm573 = vweird.f32 %v567
      %vm574 = vweird.f32 %v568
      %vm575 = vmor %vm573, %vm574
      %v576 = vsel %vm575, %v568, %v572
      %v577 = vand.u32 2147483647, %v567
      %vm578 = vcmp.eq.f32.partialorder %v577, 8.507059e+37
      %v579 = vand.u32 %v567, 2147483648
      %v580 = vor.u32 1.1754944e-38, %v579
      %v581 = vsel %vm578, %v580, %v576
      %v582 = vmul.f32 1.0, %v581
      %v583 = vadd.f32 %v518, %v561
      %v584 = vxor.u32 %v583, 2147483648
      %v585 = vmul.f32 %v584, 1.442695
      %v586 = vpow.pop %v585
      %v587 = vadd.f32 %v586, 1.0
      %v588 = vrcp.pop %v587
      %v589 = vmul.f32 %v587, %v588
      %v590 = vsub.f32 1.0, %v589
      %v591 = vmul.f32 %v588, %v590
      %v592 = vadd.f32 %v588, %v591
      %vm593 = vweird.f32 %v587
      %vm594 = vweird.f32 %v588
      %vm595 = vmor %vm593, %vm594
      %v596 = vsel %vm595, %v588, %v592
      %v597 = vand.u32 2147483647, %v587
      %vm598 = vcmp.eq.f32.partialorder %v597, 8.507059e+37
      %v599 = vand.u32 %v587, 2147483648
      %v600 = vor.u32 1.1754944e-38, %v599
      %v601 = vsel %vm598, %v600, %v596
      %v602 = vmul.f32 1.0, %v601
      %v603 = vadd.f32 %v539, %v444
      %605 = vrot.lane.b32.xlu0 %v603, 64
      %v606 = vpop.permute.xlu0 %605
      %v608 = vmul.f32 %v582, %v606
      %610 = vrot.lane.b32.xlu0 %v608, 64
      %v611 = vpop.permute.xlu0 %610
      %v613 = vadd.f32 %v516, %v611
      %v614 = vtanh.pop %v613
      %v615 = vadd.f32 %v561, %v459
      %617 = vrot.lane.b32.xlu0 %v615, 64
      %v618 = vpop.permute.xlu0 %617
      %v620 = vmul.f32 %v602, %v618
      %622 = vrot.lane.b32.xlu0 %v620, 64
      %v623 = vpop.permute.xlu0 %622
      %v625 = vadd.f32 %v518, %v623
      %v626 = vtanh.pop %v625
      %v627 = vsub.f32 1.0, %v582
      %629 = vrot.lane.b32.xlu0 %v614, 96
      %v630 = vpop.permute.xlu0 %629
      %v632 = vmul.f32 %v627, %v630
      %v633 = vmul.f32 %v582, %v483
      %v634 = vadd.f32 %v632, %v633
      %v635 = vsub.f32 1.0, %v602
      %637 = vrot.lane.b32.xlu0 %v626, 96
      %v638 = vpop.permute.xlu0 %637
      %v640 = vmul.f32 %v635, %v638
      %v641 = vmul.f32 %v602, %v502
      %v642 = vadd.f32 %v640, %v641
      %s643 = sadd.s32 %s496, 3
      %p644 = scmp.lt.s32.totalorder %s643, 8
      %s645 = scalar_select %p644, 1, 0
      %v646 = vstv %s645
      %vm647 = vcmp.eq.s32.totalorder %v646, 1
      %v648 = vsel %vm647, %v642, %v502
      %650 = vrot.lane.b32.xlu0 %v634, 96
      %v651 = vpop.permute.xlu0 %650
      %s653 = scalar_lea.vmem %s320, 4
      %654 = vst.msk [vmem:[%s653] sm:$0xf] %vm507, %v651
      %656 = vrot.lane.b32.xlu0 %v648, 96
      %v657 = vpop.permute.xlu0 %656
      %s659 = scalar_lea.vmem %s327, 12
      %660 = vst.msk [vmem:[%s659] sm:$0xf] %vm507, %v657
      %s661 = scalar_lea.vmem %s306, 8
      %v662 = vld [vmem:[%s661] sm:$0xf]
      %s663 = scalar_lea.vmem %s313, 8
      %v664 = vld [vmem:[%s663] sm:$0xf]
      %v665 = vsel %vm356, %v651, 0
      %667 = vmatpush.msra.mxu0 0.0
      %668 = vmatpush.msra.mxu0 0.0
      %669 = vmatpush.msra.mxu0 0.0
      %670 = vmatpush.msra.mxu0 0.0
      %671 = vmatpush.msra.mxu0 0.0
      %672 = vmatpush.msra.mxu0 0.0
      %673 = vmatpush.msra.mxu0 0.0
      %674 = vmatpush.msra.mxu0 0.0
      %675 = vmatpush.msra.mxu0 0.0
      %676 = vmatpush.msra.mxu0 0.0
      %677 = vmatpush.msra.mxu0 0.0
      %678 = vmatpush.msra.mxu0 0.0
      %679 = vmatpush.msra.mxu0 %v340
      %680 = vmatpush.msra.mxu0 %v339
      %681 = vmatpush.msra.mxu0 %v338
      %682 = vmatpush.msra.mxu0 %v337
      %683 = vmatmul.f32.gmra.mxu0 %v665
      %v684 = vpop.f32.mrf.mxu0
      %v685 = vadd.f32 0.0, %v684
      %686 = vdwg.mxu0
      %v687 = vsel %vm356, %v657, 0
      %689 = vmatpush.msra.mxu0 0.0
      %690 = vmatpush.msra.mxu0 0.0
      %691 = vmatpush.msra.mxu0 0.0
      %692 = vmatpush.msra.mxu0 0.0
      %693 = vmatpush.msra.mxu0 0.0
      %694 = vmatpush.msra.mxu0 0.0
      %695 = vmatpush.msra.mxu0 0.0
      %696 = vmatpush.msra.mxu0 0.0
      %697 = vmatpush.msra.mxu0 0.0
      %698 = vmatpush.msra.mxu0 0.0
      %699 = vmatpush.msra.mxu0 0.0
      %700 = vmatpush.msra.mxu0 0.0
      %701 = vmatpush.msra.mxu0 %v344
      %702 = vmatpush.msra.mxu0 %v343
      %703 = vmatpush.msra.mxu0 %v342
      %704 = vmatpush.msra.mxu0 %v341
      %705 = vmatmul.f32.gmra.mxu0 %v687
      %v706 = vpop.f32.mrf.mxu0
      %v707 = vadd.f32 0.0, %v706
      %708 = vdwg.mxu0
      %v709 = vadd.f32 %v662, %v685
      %v710 = vxor.u32 %v709, 2147483648
      %v711 = vmul.f32 %v710, 1.442695
      %v712 = vpow.pop %v711
      %v713 = vadd.f32 %v712, 1.0
      %v714 = vrcp.pop %v713
      %v715 = vmul.f32 %v713, %v714
      %v716 = vsub.f32 1.0, %v715
      %v717 = vmul.f32 %v714, %v716
      %v718 = vadd.f32 %v714, %v717
      %vm719 = vweird.f32 %v713
      %vm720 = vweird.f32 %v714
      %vm721 = vmor %vm719, %vm720
      %v722 = vsel %vm721, %v714, %v718
      %v723 = vand.u32 2147483647, %v713
      %vm724 = vcmp.eq.f32.partialorder %v723, 8.507059e+37
      %v725 = vand.u32 %v713, 2147483648
      %v726 = vor.u32 1.1754944e-38, %v725
      %v727 = vsel %vm724, %v726, %v722
      %v728 = vmul.f32 1.0, %v727
      %v729 = vadd.f32 %v664, %v707
      %v730 = vxor.u32 %v729, 2147483648
      %v731 = vmul.f32 %v730, 1.442695
      %v732 = vpow.pop %v731
      %v733 = vadd.f32 %v732, 1.0
      %v734 = vrcp.pop %v733
      %v735 = vmul.f32 %v733, %v734
      %v736 = vsub.f32 1.0, %v735
      %v737 = vmul.f32 %v734, %v736
      %v738 = vadd.f32 %v734, %v737
      %vm739 = vweird.f32 %v733
      %vm740 = vweird.f32 %v734
      %vm741 = vmor %vm739, %vm740
      %v742 = vsel %vm741, %v734, %v738
      %v743 = vand.u32 2147483647, %v733
      %vm744 = vcmp.eq.f32.partialorder %v743, 8.507059e+37
      %v745 = vand.u32 %v733, 2147483648
      %v746 = vor.u32 1.1754944e-38, %v745
      %v747 = vsel %vm744, %v746, %v742
      %v748 = vmul.f32 1.0, %v747
      %v749 = vadd.f32 %v685, %v444
      %751 = vrot.lane.b32.xlu0 %v749, 64
      %v752 = vpop.permute.xlu0 %751
      %v754 = vmul.f32 %v728, %v752
      %756 = vrot.lane.b32.xlu0 %v754, 64
      %v757 = vpop.permute.xlu0 %756
      %v759 = vadd.f32 %v662, %v757
      %v760 = vtanh.pop %v759
      %v761 = vadd.f32 %v707, %v459
      %763 = vrot.lane.b32.xlu0 %v761, 64
      %v764 = vpop.permute.xlu0 %763
      %v766 = vmul.f32 %v748, %v764
      %768 = vrot.lane.b32.xlu0 %v766, 64
      %v769 = vpop.permute.xlu0 %768
      %v771 = vadd.f32 %v664, %v769
      %v772 = vtanh.pop %v771
      %v773 = vsub.f32 1.0, %v728
      %775 = vrot.lane.b32.xlu0 %v760, 96
      %v776 = vpop.permute.xlu0 %775
      %v778 = vmul.f32 %v773, %v776
      %v779 = vmul.f32 %v728, %v634
      %v780 = vadd.f32 %v778, %v779
      %v781 = vsub.f32 1.0, %v748
      %783 = vrot.lane.b32.xlu0 %v772, 96
      %v784 = vpop.permute.xlu0 %783
      %v786 = vmul.f32 %v781, %v784
      %v787 = vmul.f32 %v748, %v648
      %v788 = vadd.f32 %v786, %v787
      %s789 = sadd.s32 %s496, 2
      %p790 = scmp.lt.s32.totalorder %s789, 8
      %s791 = scalar_select %p790, 1, 0
      %v792 = vstv %s791
      %vm793 = vcmp.eq.s32.totalorder %v792, 1
      %v794 = vsel %vm793, %v788, %v648
      %796 = vrot.lane.b32.xlu0 %v780, 96
      %v797 = vpop.permute.xlu0 %796
      %s799 = scalar_lea.vmem %s320, 8
      %800 = vst.msk [vmem:[%s799] sm:$0xf] %vm507, %v797
      %802 = vrot.lane.b32.xlu0 %v794, 96
      %v803 = vpop.permute.xlu0 %802
      %s805 = scalar_lea.vmem %s327, 8
      %806 = vst.msk [vmem:[%s805] sm:$0xf] %vm507, %v803
      %s807 = scalar_lea.vmem %s306, 12
      %v808 = vld [vmem:[%s807] sm:$0xf]
      %s809 = scalar_lea.vmem %s313, 4
      %v810 = vld [vmem:[%s809] sm:$0xf]
      %v811 = vsel %vm356, %v797, 0
      %813 = vmatpush.msra.mxu0 0.0
      %814 = vmatpush.msra.mxu0 0.0
      %815 = vmatpush.msra.mxu0 0.0
      %816 = vmatpush.msra.mxu0 0.0
      %817 = vmatpush.msra.mxu0 0.0
      %818 = vmatpush.msra.mxu0 0.0
      %819 = vmatpush.msra.mxu0 0.0
      %820 = vmatpush.msra.mxu0 0.0
      %821 = vmatpush.msra.mxu0 0.0
      %822 = vmatpush.msra.mxu0 0.0
      %823 = vmatpush.msra.mxu0 0.0
      %824 = vmatpush.msra.mxu0 0.0
      %825 = vmatpush.msra.mxu0 %v340
      %826 = vmatpush.msra.mxu0 %v339
      %827 = vmatpush.msra.mxu0 %v338
      %828 = vmatpush.msra.mxu0 %v337
      %829 = vmatmul.f32.gmra.mxu0 %v811
      %v830 = vpop.f32.mrf.mxu0
      %v831 = vadd.f32 0.0, %v830
      %832 = vdwg.mxu0
      %v833 = vsel %vm356, %v803, 0
      %835 = vmatpush.msra.mxu0 0.0
      %836 = vmatpush.msra.mxu0 0.0
      %837 = vmatpush.msra.mxu0 0.0
      %838 = vmatpush.msra.mxu0 0.0
      %839 = vmatpush.msra.mxu0 0.0
      %840 = vmatpush.msra.mxu0 0.0
      %841 = vmatpush.msra.mxu0 0.0
      %842 = vmatpush.msra.mxu0 0.0
      %843 = vmatpush.msra.mxu0 0.0
      %844 = vmatpush.msra.mxu0 0.0
      %845 = vmatpush.msra.mxu0 0.0
      %846 = vmatpush.msra.mxu0 0.0
      %847 = vmatpush.msra.mxu0 %v344
      %848 = vmatpush.msra.mxu0 %v343
      %849 = vmatpush.msra.mxu0 %v342
      %850 = vmatpush.msra.mxu0 %v341
      %851 = vmatmul.f32.gmra.mxu0 %v833
      %v852 = vpop.f32.mrf.mxu0
      %v853 = vadd.f32 0.0, %v852
      %854 = vdwg.mxu0
      %v855 = vadd.f32 %v808, %v831
      %v856 = vxor.u32 %v855, 2147483648
      %v857 = vmul.f32 %v856, 1.442695
      %v858 = vpow.pop %v857
      %v859 = vadd.f32 %v858, 1.0
      %v860 = vrcp.pop %v859
      %v861 = vmul.f32 %v859, %v860
      %v862 = vsub.f32 1.0, %v861
      %v863 = vmul.f32 %v860, %v862
      %v864 = vadd.f32 %v860, %v863
      %vm865 = vweird.f32 %v859
      %vm866 = vweird.f32 %v860
      %vm867 = vmor %vm865, %vm866
      %v868 = vsel %vm867, %v860, %v864
      %v869 = vand.u32 2147483647, %v859
      %vm870 = vcmp.eq.f32.partialorder %v869, 8.507059e+37
      %v871 = vand.u32 %v859, 2147483648
      %v872 = vor.u32 1.1754944e-38, %v871
      %v873 = vsel %vm870, %v872, %v868
      %v874 = vmul.f32 1.0, %v873
      %v875 = vadd.f32 %v810, %v853
      %v876 = vxor.u32 %v875, 2147483648
      %v877 = vmul.f32 %v876, 1.442695
      %v878 = vpow.pop %v877
      %v879 = vadd.f32 %v878, 1.0
      %v880 = vrcp.pop %v879
      %v881 = vmul.f32 %v879, %v880
      %v882 = vsub.f32 1.0, %v881
      %v883 = vmul.f32 %v880, %v882
      %v884 = vadd.f32 %v880, %v883
      %vm885 = vweird.f32 %v879
      %vm886 = vweird.f32 %v880
      %vm887 = vmor %vm885, %vm886
      %v888 = vsel %vm887, %v880, %v884
      %v889 = vand.u32 2147483647, %v879
      %vm890 = vcmp.eq.f32.partialorder %v889, 8.507059e+37
      %v891 = vand.u32 %v879, 2147483648
      %v892 = vor.u32 1.1754944e-38, %v891
      %v893 = vsel %vm890, %v892, %v888
      %v894 = vmul.f32 1.0, %v893
      %v895 = vadd.f32 %v831, %v444
      %897 = vrot.lane.b32.xlu0 %v895, 64
      %v898 = vpop.permute.xlu0 %897
      %v900 = vmul.f32 %v874, %v898
      %902 = vrot.lane.b32.xlu0 %v900, 64
      %v903 = vpop.permute.xlu0 %902
      %v905 = vadd.f32 %v808, %v903
      %v906 = vtanh.pop %v905
      %v907 = vadd.f32 %v853, %v459
      %909 = vrot.lane.b32.xlu0 %v907, 64
      %v910 = vpop.permute.xlu0 %909
      %v912 = vmul.f32 %v894, %v910
      %914 = vrot.lane.b32.xlu0 %v912, 64
      %v915 = vpop.permute.xlu0 %914
      %v917 = vadd.f32 %v810, %v915
      %v918 = vtanh.pop %v917
      %v919 = vsub.f32 1.0, %v874
      %921 = vrot.lane.b32.xlu0 %v906, 96
      %v922 = vpop.permute.xlu0 %921
      %v924 = vmul.f32 %v919, %v922
      %v925 = vmul.f32 %v874, %v780
      %v926 = vadd.f32 %v924, %v925
      %v927 = vsub.f32 1.0, %v894
      %929 = vrot.lane.b32.xlu0 %v918, 96
      %v930 = vpop.permute.xlu0 %929
      %v932 = vmul.f32 %v927, %v930
      %v933 = vmul.f32 %v894, %v794
      %v934 = vadd.f32 %v932, %v933
      %s935 = sadd.s32 %s496, 1
      %p936 = scmp.lt.s32.totalorder %s935, 8
      %s937 = scalar_select %p936, 1, 0
      %v938 = vstv %s937
      %vm939 = vcmp.eq.s32.totalorder %v938, 1
      %v940 = vsel %vm939, %v934, %v794
      %942 = vrot.lane.b32.xlu0 %v926, 96
      %v943 = vpop.permute.xlu0 %942
      %s945 = scalar_lea.vmem %s320, 12
      %946 = vst.msk [vmem:[%s945] sm:$0xf] %vm507, %v943
      %948 = vrot.lane.b32.xlu0 %v940, 96
      %v949 = vpop.permute.xlu0 %948
      %s951 = scalar_lea.vmem %s327, 4
      %952 = vst.msk [vmem:[%s951] sm:$0xf] %vm507, %v949
      %s953 = scalar_lea.vmem %s306, 16
      %v954 = vld [vmem:[%s953] sm:$0xf]
      %v955 = vld [vmem:[%s313] sm:$0xf]
      %v956 = vsel %vm356, %v943, 0
      %958 = vmatpush.msra.mxu0 0.0
      %959 = vmatpush.msra.mxu0 0.0
      %960 = vmatpush.msra.mxu0 0.0
      %961 = vmatpush.msra.mxu0 0.0
      %962 = vmatpush.msra.mxu0 0.0
      %963 = vmatpush.msra.mxu0 0.0
      %964 = vmatpush.msra.mxu0 0.0
      %965 = vmatpush.msra.mxu0 0.0
      %966 = vmatpush.msra.mxu0 0.0
      %967 = vmatpush.msra.mxu0 0.0
      %968 = vmatpush.msra.mxu0 0.0
      %969 = vmatpush.msra.mxu0 0.0
      %970 = vmatpush.msra.mxu0 %v340
      %971 = vmatpush.msra.mxu0 %v339
      %972 = vmatpush.msra.mxu0 %v338
      %973 = vmatpush.msra.mxu0 %v337
      %974 = vmatmul.f32.gmra.mxu0 %v956
      %v975 = vpop.f32.mrf.mxu0
      %v976 = vadd.f32 0.0, %v975
      %977 = vdwg.mxu0
      %v978 = vsel %vm356, %v949, 0
      %980 = vmatpush.msra.mxu0 0.0
      %981 = vmatpush.msra.mxu0 0.0
      %982 = vmatpush.msra.mxu0 0.0
      %983 = vmatpush.msra.mxu0 0.0
      %984 = vmatpush.msra.mxu0 0.0
      %985 = vmatpush.msra.mxu0 0.0
      %986 = vmatpush.msra.mxu0 0.0
      %987 = vmatpush.msra.mxu0 0.0
      %988 = vmatpush.msra.mxu0 0.0
      %989 = vmatpush.msra.mxu0 0.0
      %990 = vmatpush.msra.mxu0 0.0
      %991 = vmatpush.msra.mxu0 0.0
      %992 = vmatpush.msra.mxu0 %v344
      %993 = vmatpush.msra.mxu0 %v343
      %994 = vmatpush.msra.mxu0 %v342
      %995 = vmatpush.msra.mxu0 %v341
      %996 = vmatmul.f32.gmra.mxu0 %v978
      %v997 = vpop.f32.mrf.mxu0
      %v998 = vadd.f32 0.0, %v997
      %999 = vdwg.mxu0
      %v1000 = vadd.f32 %v954, %v976
      %v1001 = vxor.u32 %v1000, 2147483648
      %v1002 = vmul.f32 %v1001, 1.442695
      %v1003 = vpow.pop %v1002
      %v1004 = vadd.f32 %v1003, 1.0
      %v1005 = vrcp.pop %v1004
      %v1006 = vmul.f32 %v1004, %v1005
      %v1007 = vsub.f32 1.0, %v1006
      %v1008 = vmul.f32 %v1005, %v1007
      %v1009 = vadd.f32 %v1005, %v1008
      %vm1010 = vweird.f32 %v1004
      %vm1011 = vweird.f32 %v1005
      %vm1012 = vmor %vm1010, %vm1011
      %v1013 = vsel %vm1012, %v1005, %v1009
      %v1014 = vand.u32 2147483647, %v1004
      %vm1015 = vcmp.eq.f32.partialorder %v1014, 8.507059e+37
      %v1016 = vand.u32 %v1004, 2147483648
      %v1017 = vor.u32 1.1754944e-38, %v1016
      %v1018 = vsel %vm1015, %v1017, %v1013
      %v1019 = vmul.f32 1.0, %v1018
      %v1020 = vadd.f32 %v955, %v998
      %v1021 = vxor.u32 %v1020, 2147483648
      %v1022 = vmul.f32 %v1021, 1.442695
      %v1023 = vpow.pop %v1022
      %v1024 = vadd.f32 %v1023, 1.0
      %v1025 = vrcp.pop %v1024
      %v1026 = vmul.f32 %v1024, %v1025
      %v1027 = vsub.f32 1.0, %v1026
      %v1028 = vmul.f32 %v1025, %v1027
      %v1029 = vadd.f32 %v1025, %v1028
      %vm1030 = vweird.f32 %v1024
      %vm1031 = vweird.f32 %v1025
      %vm1032 = vmor %vm1030, %vm1031
      %v1033 = vsel %vm1032, %v1025, %v1029
      %v1034 = vand.u32 2147483647, %v1024
      %vm1035 = vcmp.eq.f32.partialorder %v1034, 8.507059e+37
      %v1036 = vand.u32 %v1024, 2147483648
      %v1037 = vor.u32 1.1754944e-38, %v1036
      %v1038 = vsel %vm1035, %v1037, %v1033
      %v1039 = vmul.f32 1.0, %v1038
      %v1040 = vadd.f32 %v976, %v444
      %1042 = vrot.lane.b32.xlu0 %v1040, 64
      %v1043 = vpop.permute.xlu0 %1042
      %v1045 = vmul.f32 %v1019, %v1043
      %1047 = vrot.lane.b32.xlu0 %v1045, 64
      %v1048 = vpop.permute.xlu0 %1047
      %v1050 = vadd.f32 %v954, %v1048
      %v1051 = vtanh.pop %v1050
      %v1052 = vadd.f32 %v998, %v459
      %1054 = vrot.lane.b32.xlu0 %v1052, 64
      %v1055 = vpop.permute.xlu0 %1054
      %v1057 = vmul.f32 %v1039, %v1055
      %1059 = vrot.lane.b32.xlu0 %v1057, 64
      %v1060 = vpop.permute.xlu0 %1059
      %v1062 = vadd.f32 %v955, %v1060
      %v1063 = vtanh.pop %v1062
      %v1064 = vsub.f32 1.0, %v1019
      %1066 = vrot.lane.b32.xlu0 %v1051, 96
      %v1067 = vpop.permute.xlu0 %1066
      %v1069 = vmul.f32 %v1064, %v1067
      %v1070 = vmul.f32 %v1019, %v926
      %v1071 = vadd.f32 %v1069, %v1070
      %v1072 = vsub.f32 1.0, %v1039
      %1074 = vrot.lane.b32.xlu0 %v1063, 96
      %v1075 = vpop.permute.xlu0 %1074
      %v1077 = vmul.f32 %v1072, %v1075
      %v1078 = vmul.f32 %v1039, %v940
      %v1079 = vadd.f32 %v1077, %v1078
      %p1080 = scmp.lt.s32.totalorder %s496, 8
      %s1081 = scalar_select %p1080, 1, 0
      %v1082 = vstv %s1081
      %vm1083 = vcmp.eq.s32.totalorder %v1082, 1
      %v1084 = vsel %vm1083, %v1079, %v940
      %1086 = vrot.lane.b32.xlu0 %v1071, 96
      %v1087 = vpop.permute.xlu0 %1086
      %s1089 = scalar_lea.vmem %s320, 16
      %1090 = vst.msk [vmem:[%s1089] sm:$0xf] %vm507, %v1087
      %1092 = vrot.lane.b32.xlu0 %v1084, 96
      %v1093 = vpop.permute.xlu0 %1092
      %1095 = vst.msk [vmem:[%s327] sm:$0xf] %vm507, %v1093
      %1096 = vst.msk [vmem:[#allocation2] sm:$0xf] %vm507, %v1087
      %1097 = vst.msk [vmem:[#allocation3] sm:$0xf] %vm507, %v1093
      %s1098 = smul.u32 5, %s19
      %p1099 = scmp.lt.s32.totalorder %s1098, 9
      %s1100 = scalar_select %p1099, %s1098, 9
      %s1101 = smul.addr %s1100, 4
      %s1102 = scalar_lea.vmem %s6, %s1101
      %s1103 = ssub.s32 1, %s19
      %s1104 = smul.u32 5, %s1103
      %p1105 = scmp.lt.s32.totalorder %s1104, 9
      %s1106 = scalar_select %p1105, %s1104, 9
      %s1107 = smul.addr %s1106, 4
      %s1108 = scalar_lea.vmem %s7, %s1107
      // Predicated region
      $region49: #{encoder_forward.1} parent=43 // pred_check
        %p1109 = pneg %p175
      $region50: #{encoder_forward.1} parent=43 // pred_check_branch
        %1111 = sbr.rel (%p1109) target = $region52
      $region51: #{encoder_forward.1} parent=43 // pred_region
        %s1112 = smul.u32 5, %s19
      $region52: #{encoder_forward.1} parent=43 // pred_fallthru
        _
      // Predicated region
      $region53: #{encoder_forward.1} parent=43 // pred_check
        %p1113 = pneg %p203
      $region54: #{encoder_forward.1} parent=43 // pred_check_branch
        %1115 = sbr.rel (%p1113) target = $region56
      $region55: #{encoder_forward.1} parent=43 // pred_region
        %s1116 = ssub.s32 1, %s19
        %s1117 = smul.u32 5, %s1116
      $region56: #{encoder_forward.1} parent=43 // pred_fallthru
        _
    $region44: #{encoder_forward.1} parent=5 // pred_fallthru
      _
    %p1118 = scmp.le.s32.totalorder 2, %s14
    // Predicated region
    $region57: #{encoder_forward.1} parent=5 // pred_check
      %p1119 = pneg %p1118
    $region58: #{encoder_forward.1} parent=5 // pred_check_branch
      %1121 = sbr.rel (%p1119) target = $region60
    $region59: #{encoder_forward.1} parent=5 // pred_region
      %s1122 = ssub.s32 %s14, 2
      // Predicated region
      $region61: #{encoder_forward.1} parent=59 // pred_check
        %p1123 = pneg %p181
      $region62: #{encoder_forward.1} parent=59 // pred_check_branch
        %1125 = sbr.rel (%p1123) target = $region64
      $region63: #{encoder_forward.1} parent=59 // pred_region
        %s1126 = smul.u32 5, %s20
        %p1127 = scmp.lt.s32.totalorder %s1126, 9
        %s1128 = scalar_select %p1127, %s1126, 9
        %s1129 = smul.addr %s1128, 4
        %s1130 = scalar_lea.vmem %s6, %s1129
      $region64: #{encoder_forward.1} parent=59 // pred_fallthru
        _
      // Predicated region
      $region65: #{encoder_forward.1} parent=59 // pred_check
        %p1131 = pneg %p209
      $region66: #{encoder_forward.1} parent=59 // pred_check_branch
        %1133 = sbr.rel (%p1131) target = $region68
      $region67: #{encoder_forward.1} parent=59 // pred_region
        %s1134 = ssub.s32 1, %s20
        %s1135 = smul.u32 5, %s1134
        %p1136 = scmp.lt.s32.totalorder %s1135, 9
        %s1137 = scalar_select %p1136, %s1135, 9
        %s1138 = smul.addr %s1137, 4
        %s1139 = scalar_lea.vmem %s7, %s1138
      $region68: #{encoder_forward.1} parent=59 // pred_fallthru
        _
    $region60: #{encoder_forward.1} parent=5 // pred_fallthru
      _
  $region6: #{encoder_forward.1} parent=0 // loop_footer
    %s18 = sadd.s32 1, %s14
  $region7: #{encoder_forward.1} parent=0 // loop_footer_branch
    %13 = sbr.rel target = $region3
  $region8: #{encoder_forward.1} parent=0 // loop_exit
    _

</llo_original>
